<compile_context>
chip_gen: v5e
topology: v5e:2x2
jax: 0.10.0
libtpu: 0.0.40
codegen_flags: <defaults>
</compile_context>

<pallas_src>
import functools

import jax
import jax.numpy as jnp
from jax import lax
from jax.experimental import pallas as pl
from jax.experimental.pallas import tpu as pltpu

EPS_LN = 1e-5
EPS_BN = 1e-5


def _sigmoid(x):
    # exp rides the EUP slot; approximate reciprocal also rides EUP (frees VALU).
    return pl.reciprocal(1.0 + jnp.exp(-x), approx=True)


def _berp_conv_kernel(
    x_ref,        # (1, TILE_T, C) current time tile
    xp_ref,       # (1, HALO,  C)  rows just before the tile (clamped at t=0)
    xn_ref,       # (1, HALO,  C)  rows just after the tile (clamped at last tile)
    ln_g_ref,     # (1, C) LayerNorm gamma
    ln_b_ref,     # (1, C) LayerNorm beta
    w1_ref,       # (C, 2C) bf16  pointwise conv #1 (transposed), [value | gate]
    b1_ref,       # (1, 2C) f32
    dww_ref,      # (K, C)  depthwise conv weight (time-major)
    bns_ref,      # (1, C) folded BN scale  = bn_g * rsqrt(bn_v + eps)
    bnt_ref,      # (1, C) folded BN shift  = (dw_b - bn_m) * scale + bn_b
    w2_ref,       # (C, C) bf16  pointwise conv #2 (transposed)
    b2_ref,       # (1, C) f32
    o_ref,        # (1, TILE_T, C) output tile
    *,
    seq_len,      # true (unpadded) sequence length T
    kernel_size,  # K (odd)
    halo,         # HALO rows on each side (multiple of 8, >= (K-1)//2)
):
    TILE_T = o_ref.shape[1]
    C = o_ref.shape[2]
    K = kernel_size
    PAD = (K - 1) // 2
    HALO = halo
    T_EXT = TILE_T + 2 * HALO

    t = pl.program_id(1)

    # ---- Build extended (halo'd) time window, channels-last ------------------
    x_ext = jnp.concatenate(
        [xp_ref[0], x_ref[0], xn_ref[0]], axis=0).astype(jnp.float32)   # (T_EXT, C)

    # ---- LayerNorm over channel dim ------------------------------------------
    mean = jnp.mean(x_ext, axis=-1, keepdims=True)
    var = jnp.mean(jnp.square(x_ext - mean), axis=-1, keepdims=True)
    y = (x_ext - mean) * lax.rsqrt(var + EPS_LN)
    y = y * ln_g_ref[...] + ln_b_ref[...]                               # (T_EXT, C)

    # ---- Pointwise conv #1 + GLU: one N=2C bf16 matmul, lane-aligned split ---
    ag = jnp.dot(y.astype(jnp.bfloat16), w1_ref[...],
                 preferred_element_type=jnp.float32) + b1_ref[...]      # (T_EXT, 2C)
    a = ag[:, :C]
    g = ag[:, C:]
    z = a * _sigmoid(g)                                                 # (T_EXT, C)

    # ---- Zero rows outside the true sequence (halo clamping / tail padding) --
    row = lax.broadcasted_iota(jnp.int32, (T_EXT, 1), 0)
    grow = t * TILE_T - HALO + row                                      # global time index
    z = jnp.where((grow >= 0) & (grow < seq_len), z, 0.0)

    # ---- Depthwise conv along time (kernel K, padding (K-1)//2) --------------
    # Taps grouped by (offset mod 8): a single sublane-unaligned shift per
    # residue; all tap slices within a group are 8-row aligned (free vreg picks).
    base = HALO - PAD
    acc = None
    for r in range(8):
        ks = [k for k in range(K) if (base + k) % 8 == r]
        if not ks:
            continue
        zr = z if r == 0 else z[r:, :]      # one unaligned sublane shift per residue
        for k in ks:                         # static unroll
            start = (base + k) - r           # multiple of 8 -> aligned slice
            tap = zr[start:start + TILE_T, :] * dww_ref[k:k + 1, :]
            acc = tap if acc is None else acc + tap

    # ---- Fused (depthwise bias + BatchNorm running stats) + Swish ------------
    bn = acc * bns_ref[...] + bnt_ref[...]
    s = bn * _sigmoid(bn)

    # ---- Pointwise conv #2 (bf16 MXU) -----------------------------------------
    out = jnp.dot(s.astype(jnp.bfloat16), w2_ref[...],
                  preferred_element_type=jnp.float32) + b2_ref[...]

    # Dropout is identity in eval mode; final transpose(1,2) is a no-op here.
    o_ref[0] = out.astype(o_ref.dtype)


def berp_conv_block(x, params, *, kernel_size=31, tile_t=512):
    """x: (B, T, C) float32, returns (B, T, C)."""
    B, T, C = x.shape
    K = kernel_size
    assert (K - 1) % 2 == 0, "kernel_size should be odd"
    PAD = (K - 1) // 2

    # Halo rows per side: >= PAD, multiple of 8 (sublane aligned).
    HALO = max(8, -(-PAD // 8) * 8)
    # Time tile: multiple of HALO, defaulting large enough to amortize
    # halo recompute + per-grid-step overhead (VMEM is a few MB at C=128).
    TILE_T = min(tile_t, T)
    TILE_T = max(HALO, -(-TILE_T // HALO) * HALO)
    assert HALO >= PAD and HALO % 8 == 0 and TILE_T % HALO == 0
    T_pad = -(-T // TILE_T) * TILE_T
    NT = T_pad // TILE_T
    R = TILE_T // HALO           # halo blocks per tile
    NHB = T_pad // HALO          # total halo-sized blocks along padded time

    if T_pad != T:
        x = jnp.pad(x, ((0, 0), (0, T_pad - T), (0, 0)))

    f32, bf16 = jnp.float32, jnp.bfloat16

    # --- Parameter precompute (folded BN, bf16 weights) ------------------------
    w1 = params["w1"].astype(bf16)           # (C, 2C), columns [0:C]=value, [C:2C]=gate
    b1 = params["b1"].astype(f32)            # (1, 2C)
    w2 = params["w2"].astype(bf16)
    b2 = params["b2"].astype(f32)
    bn_scale = (params["bn_g"].astype(f32) *
                lax.rsqrt(params["bn_v"].astype(f32) + EPS_BN))
    bn_shift = ((params["dw_b"].astype(f32) - params["bn_m"].astype(f32)) * bn_scale
                + params["bn_b"].astype(f32))

    param_vals = [
        params["ln_g"].astype(f32), params["ln_b"].astype(f32),
        w1, b1,
        params["dw_w"].astype(f32),
        bn_scale, bn_shift,
        w2, b2,
    ]
    # Constant block index -> weights stay resident across grid steps (no re-DMA).
    param_specs = [pl.BlockSpec(p.shape, lambda b, t: (0, 0)) for p in param_vals]

    x_spec = pl.BlockSpec((1, TILE_T, C), lambda b, t: (b, t, 0))
    prev_spec = pl.BlockSpec((1, HALO, C),
                             lambda b, t: (b, jnp.maximum(t * R - 1, 0), 0))
    next_spec = pl.BlockSpec((1, HALO, C),
                             lambda b, t: (b, jnp.minimum(t * R + R, NHB - 1), 0))

    kernel = functools.partial(
        _berp_conv_kernel, seq_len=T, kernel_size=K, halo=HALO)

    out = pl.pallas_call(
        kernel,
        out_shape=jax.ShapeDtypeStruct((B, T_pad, C), x.dtype),
        grid_spec=pltpu.PrefetchScalarGridSpec(
            num_scalar_prefetch=0,
            grid=(B, NT),
            in_specs=[x_spec, prev_spec, next_spec] + param_specs,
            out_specs=pl.BlockSpec((1, TILE_T, C), lambda b, t: (b, t, 0)),
        ),
        compiler_params=pltpu.CompilerParams(
            # Both axes independent -> megacore / v7x two-TC sharding.
            dimension_semantics=("parallel", "parallel"),
            vmem_limit_bytes=32 * 1024 * 1024,   # safe on v5e/v6e/v7x; tiles well under
        ),
    )(x, x, x, *param_vals)

    if T_pad != T:
        out = out[:, :T, :]
    return out


def make_params(key, C, K, expansion=2):
    """Deterministic parameter init (PyTorch-default-like: norms identity-init,
    conv weights/biases small random)."""
    k1, k2, k3, k4, k5, k6 = jax.random.split(key, 6)
    f32 = jnp.float32
    Cx = C * expansion
    return {
        # LayerNorm
        "ln_g": jnp.ones((1, C), f32),
        "ln_b": jnp.zeros((1, C), f32),
        # Pointwise conv #1: torch weight (2C, C, 1) -> stored transposed (C, 2C)
        "w1": jax.random.normal(k1, (C, Cx), f32) * 0.1,
        "b1": jax.random.normal(k2, (1, Cx), f32) * 0.1,
        # Depthwise conv: torch weight (C, 1, K) -> stored time-major (K, C)
        "dw_w": jax.random.normal(k3, (K, C), f32) * 0.1,
        "dw_b": jax.random.normal(k4, (1, C), f32) * 0.1,
        # BatchNorm1d (inference / running stats)
        "bn_g": jnp.ones((1, C), f32),
        "bn_b": jnp.zeros((1, C), f32),
        "bn_m": jnp.zeros((1, C), f32),
        "bn_v": jnp.ones((1, C), f32),
        # Pointwise conv #2: torch weight (C, C, 1) -> stored transposed (C, C)
        "w2": jax.random.normal(k5, (C, C), f32) * 0.1,
        "b2": jax.random.normal(k6, (1, C), f32) * 0.1,
    }


def berp_conv_block_ref(x, params, *, kernel_size=31):
    """Pure-JAX reference (channels-last layout). Matmuls use the same bf16
    inputs / f32 accumulation as the kernel (intentional MXU precision)."""
    B, T, C = x.shape
    K = kernel_size
    PAD = (K - 1) // 2
    xf = x.astype(jnp.float32)

    mean = jnp.mean(xf, axis=-1, keepdims=True)
    var = jnp.mean(jnp.square(xf - mean), axis=-1, keepdims=True)
    y = (xf - mean) * lax.rsqrt(var + EPS_LN)
    y = y * params["ln_g"][0] + params["ln_b"][0]

    y16 = y.astype(jnp.bfloat16)
    w1 = params["w1"].astype(jnp.bfloat16)
    ag = jnp.einsum("btc,cd->btd", y16, w1,
                    preferred_element_type=jnp.float32) + params["b1"][0]
    a = ag[..., :C]
    g = ag[..., C:]
    z = a * jax.nn.sigmoid(g)

    zp = jnp.pad(z, ((0, 0), (PAD, PAD), (0, 0)))
    acc = jnp.zeros((B, T, C), jnp.float32)
    for k in range(K):
        acc = acc + zp[:, k:k + T, :] * params["dw_w"][k][None, None, :]
    acc = acc + params["dw_b"][0]

    bn = (acc - params["bn_m"][0]) * lax.rsqrt(params["bn_v"][0] + EPS_BN)
    bn = bn * params["bn_g"][0] + params["bn_b"][0]
    s = bn * jax.nn.sigmoid(bn)
    out = jnp.einsum("btc,cd->btd", s.astype(jnp.bfloat16),
                     params["w2"].astype(jnp.bfloat16),
                     preferred_element_type=jnp.float32) + params["b2"][0]
    return out.astype(x.dtype)


if __name__ == "__main__":
    # Small but representative: C=128 keeps the lane dim dense; T=80 with
    # tile_t=32 exercises multiple time tiles, halo exchange and tail masking;
    # the default tile_t exercises the single-tile / clamped-halo path.
    B, T, C = 2, 80, 128
    K = 31  # module default kernel_size

    key = jax.random.PRNGKey(0)
    kx, kp = jax.random.split(key)
    x = jax.random.normal(kx, (B, T, C), jnp.float32)
    params = make_params(kp, C, K)

    ref = berp_conv_block_ref(x, params, kernel_size=K)

    # Multi-tile path (tail masking + halo exchange between tiles).
    fn_small = jax.jit(functools.partial(berp_conv_block, kernel_size=K, tile_t=32))
    out_small = jax.block_until_ready(fn_small(x, params))
    assert out_small.shape == (B, T, C), out_small.shape
    err_small = float(jnp.max(jnp.abs(out_small - ref)))
    assert jnp.allclose(out_small, ref, atol=1e-2, rtol=1e-2), err_small

    # Default (large-tile) path.
    fn_big = jax.jit(functools.partial(berp_conv_block, kernel_size=K))
    out_big = jax.block_until_ready(fn_big(x, params))
    err_big = float(jnp.max(jnp.abs(out_big - ref)))
    assert jnp.allclose(out_big, ref, atol=1e-2, rtol=1e-2), err_big

    print("KERNEL_OK")
</pallas_src>

<mosaic_0001>
module attributes {stable_mosaic.version = 11 : i64} {
  func.func @_berp_conv_kernel(%arg0: i32, %arg1: i32, %arg2: memref<1x32x128xf32, #tpu.memory_space<vmem>>, %arg3: memref<1x16x128xf32, #tpu.memory_space<vmem>>, %arg4: memref<1x16x128xf32, #tpu.memory_space<vmem>>, %arg5: memref<1x128xf32, #tpu.memory_space<vmem>>, %arg6: memref<1x128xf32, #tpu.memory_space<vmem>>, %arg7: memref<128x256xbf16, #tpu.memory_space<vmem>>, %arg8: memref<1x256xf32, #tpu.memory_space<vmem>>, %arg9: memref<31x128xf32, #tpu.memory_space<vmem>>, %arg10: memref<1x128xf32, #tpu.memory_space<vmem>>, %arg11: memref<1x128xf32, #tpu.memory_space<vmem>>, %arg12: memref<128x128xbf16, #tpu.memory_space<vmem>>, %arg13: memref<1x128xf32, #tpu.memory_space<vmem>>, %arg14: memref<1x32x128xf32, #tpu.memory_space<vmem>>) attributes {dimension_semantics = [#tpu.dimension_semantics<parallel>, #tpu.dimension_semantics<parallel>], iteration_bounds = array<i64: 2, 3>, scalar_prefetch = 0 : i64, scratch_operands = 0 : i64, tpu.core_type = #tpu.core_type<tc>, window_params = [{transform_indices = @transform_0, window_bounds = array<i64: 1, 32, 128>}, {transform_indices = @transform_1, window_bounds = array<i64: 1, 16, 128>}, {transform_indices = @transform_2, window_bounds = array<i64: 1, 16, 128>}, {pipeline_mode = #tpu.pipeline_mode<synchronous>, transform_indices = @transform_3, window_bounds = array<i64: 1, 128>}, {pipeline_mode = #tpu.pipeline_mode<synchronous>, transform_indices = @transform_4, window_bounds = array<i64: 1, 128>}, {pipeline_mode = #tpu.pipeline_mode<synchronous>, transform_indices = @transform_5, window_bounds = array<i64: 128, 256>}, {pipeline_mode = #tpu.pipeline_mode<synchronous>, transform_indices = @transform_6, window_bounds = array<i64: 1, 256>}, {pipeline_mode = #tpu.pipeline_mode<synchronous>, transform_indices = @transform_7, window_bounds = array<i64: 31, 128>}, {pipeline_mode = #tpu.pipeline_mode<synchronous>, transform_indices = @transform_8, window_bounds = array<i64: 1, 128>}, {pipeline_mode = #tpu.pipeline_mode<synchronous>, transform_indices = @transform_9, window_bounds = array<i64: 1, 128>}, {pipeline_mode = #tpu.pipeline_mode<synchronous>, transform_indices = @transform_10, window_bounds = array<i64: 128, 128>}, {pipeline_mode = #tpu.pipeline_mode<synchronous>, transform_indices = @transform_11, window_bounds = array<i64: 1, 128>}, {transform_indices = @transform_12, window_bounds = array<i64: 1, 32, 128>}]} {
    %c0 = arith.constant 0 : index
    %c0_0 = arith.constant 0 : index
    %c0_1 = arith.constant 0 : index
    %0 = vector.load %arg3[%c0, %c0_0, %c0_1] : memref<1x16x128xf32, #tpu.memory_space<vmem>>, vector<1x16x128xf32>
    %1 = vector.shape_cast %0 : vector<1x16x128xf32> to vector<16x128xf32>
    %c0_2 = arith.constant 0 : index
    %c0_3 = arith.constant 0 : index
    %c0_4 = arith.constant 0 : index
    %2 = vector.load %arg2[%c0_2, %c0_3, %c0_4] : memref<1x32x128xf32, #tpu.memory_space<vmem>>, vector<1x32x128xf32>
    %3 = vector.shape_cast %2 : vector<1x32x128xf32> to vector<32x128xf32>
    %c0_5 = arith.constant 0 : index
    %c0_6 = arith.constant 0 : index
    %c0_7 = arith.constant 0 : index
    %4 = vector.load %arg4[%c0_5, %c0_6, %c0_7] : memref<1x16x128xf32, #tpu.memory_space<vmem>>, vector<1x16x128xf32>
    %5 = vector.shape_cast %4 : vector<1x16x128xf32> to vector<16x128xf32>
    %6 = tpu.concatenate %1, %3, %5 in 0 : vector<16x128xf32>, vector<32x128xf32>, vector<16x128xf32> -> vector<64x128xf32>
    %cst = arith.constant dense<0.000000e+00> : vector<64xf32>
    %7 = vector.multi_reduction <add>, %6, %cst [1] : vector<64x128xf32> to vector<64xf32>
    %8 = vector.shape_cast %7 : vector<64xf32> to vector<64x1xf32>
    %cst_8 = arith.constant 1.280000e+02 : f32
    %9 = vector.broadcast %cst_8 : f32 to vector<64x1xf32>
    %10 = arith.divf %8, %9 : vector<64x1xf32>
    %11 = vector.broadcast %10 : vector<64x1xf32> to vector<64x128xf32>
    %12 = arith.subf %6, %11 : vector<64x128xf32>
    %13 = arith.mulf %12, %12 : vector<64x128xf32>
    %cst_9 = arith.constant dense<0.000000e+00> : vector<64xf32>
    %14 = vector.multi_reduction <add>, %13, %cst_9 [1] : vector<64x128xf32> to vector<64xf32>
    %15 = vector.shape_cast %14 : vector<64xf32> to vector<64x1xf32>
    %cst_10 = arith.constant 1.280000e+02 : f32
    %16 = vector.broadcast %cst_10 : f32 to vector<64x1xf32>
    %17 = arith.divf %15, %16 : vector<64x1xf32>
    %18 = vector.broadcast %10 : vector<64x1xf32> to vector<64x128xf32>
    %19 = arith.subf %6, %18 : vector<64x128xf32>
    %cst_11 = arith.constant 9.99999974E-6 : f32
    %20 = vector.broadcast %cst_11 : f32 to vector<64x1xf32>
    %21 = arith.addf %17, %20 : vector<64x1xf32>
    %22 = math.rsqrt %21 : vector<64x1xf32>
    %23 = vector.broadcast %22 : vector<64x1xf32> to vector<64x128xf32>
    %24 = arith.mulf %19, %23 : vector<64x128xf32>
    %c0_12 = arith.constant 0 : index
    %c0_13 = arith.constant 0 : index
    %25 = vector.load %arg5[%c0_12, %c0_13] : memref<1x128xf32, #tpu.memory_space<vmem>>, vector<1x128xf32>
    %26 = vector.broadcast %25 : vector<1x128xf32> to vector<64x128xf32>
    %27 = arith.mulf %24, %26 : vector<64x128xf32>
    %c0_14 = arith.constant 0 : index
    %c0_15 = arith.constant 0 : index
    %28 = vector.load %arg6[%c0_14, %c0_15] : memref<1x128xf32, #tpu.memory_space<vmem>>, vector<1x128xf32>
    %29 = vector.broadcast %28 : vector<1x128xf32> to vector<64x128xf32>
    %30 = arith.addf %27, %29 : vector<64x128xf32>
    %31 = arith.truncf %30 : vector<64x128xf32> to vector<64x128xbf16>
    %c0_16 = arith.constant 0 : index
    %c0_17 = arith.constant 0 : index
    %32 = vector.load %arg7[%c0_16, %c0_17] : memref<128x256xbf16, #tpu.memory_space<vmem>>, vector<128x256xbf16>
    %cst_18 = arith.constant dense<0.000000e+00> : vector<64x256xf32>
    %33 = tpu.matmul %31, %32, %cst_18 {dimension_numbers = #tpu.dot_dimension_numbers<[1], [0], [0], [1], [0, 0, 1, 1], [], []>} : vector<64x128xbf16>, vector<128x256xbf16>, vector<64x256xf32> -> vector<64x256xf32>
    %c0_19 = arith.constant 0 : index
    %c0_20 = arith.constant 0 : index
    %34 = vector.load %arg8[%c0_19, %c0_20] : memref<1x256xf32, #tpu.memory_space<vmem>>, vector<1x256xf32>
    %35 = vector.broadcast %34 : vector<1x256xf32> to vector<64x256xf32>
    %36 = arith.addf %33, %35 : vector<64x256xf32>
    %37 = vector.extract_strided_slice %36 {offsets = [0, 0], sizes = [64, 128], strides = [1, 1]} : vector<64x256xf32> to vector<64x128xf32>
    %38 = vector.extract_strided_slice %36 {offsets = [0, 128], sizes = [64, 128], strides = [1, 1]} : vector<64x256xf32> to vector<64x128xf32>
    %cst_21 = arith.constant 0.000000e+00 : f32
    %39 = vector.broadcast %cst_21 : f32 to vector<64x128xf32>
    %40 = arith.subf %39, %38 : vector<64x128xf32>
    %41 = math.exp %40 : vector<64x128xf32>
    %cst_22 = arith.constant 1.000000e+00 : f32
    %42 = vector.broadcast %cst_22 : f32 to vector<64x128xf32>
    %43 = arith.addf %42, %41 : vector<64x128xf32>
    %44 = tpu.reciprocal %43 {approx = true} : vector<64x128xf32> -> vector<64x128xf32>
    %45 = arith.mulf %37, %44 : vector<64x128xf32>
    %46 = tpu.iota {dimensions = array<i32: 0>} : vector<64x1xi32>
    %c32_i32 = arith.constant 32 : i32
    %47 = arith.muli %arg1, %c32_i32 : i32
    %c16_i32 = arith.constant 16 : i32
    %48 = arith.subi %47, %c16_i32 : i32
    %49 = vector.broadcast %48 : i32 to vector<64x1xi32>
    %50 = arith.addi %49, %46 : vector<64x1xi32>
    %c0_i32 = arith.constant 0 : i32
    %51 = vector.broadcast %c0_i32 : i32 to vector<64x1xi32>
    %52 = arith.cmpi sge, %50, %51 : vector<64x1xi32>
    %c80_i32 = arith.constant 80 : i32
    %53 = vector.broadcast %c80_i32 : i32 to vector<64x1xi32>
    %54 = arith.cmpi slt, %50, %53 : vector<64x1xi32>
    %55 = arith.andi %52, %54 : vector<64x1xi1>
    %cst_23 = arith.constant 0.000000e+00 : f32
    %56 = vector.shape_cast %55 : vector<64x1xi1> to vector<64x1xi1>
    %57 = vector.broadcast %56 : vector<64x1xi1> to vector<64x128xi1>
    %58 = vector.broadcast %cst_23 : f32 to vector<64x128xf32>
    %59 = arith.select %57, %45, %58 : vector<64x128xi1>, vector<64x128xf32>
    %60 = vector.extract_strided_slice %59 {offsets = [8, 0], sizes = [32, 128], strides = [1, 1]} : vector<64x128xf32> to vector<32x128xf32>
    %c7 = arith.constant 7 : index
    %c0_24 = arith.constant 0 : index
    %61 = vector.load %arg9[%c7, %c0_24] : memref<31x128xf32, #tpu.memory_space<vmem>>, vector<1x128xf32>
    %62 = vector.broadcast %61 : vector<1x128xf32> to vector<32x128xf32>
    %63 = arith.mulf %60, %62 : vector<32x128xf32>
    %64 = vector.extract_strided_slice %59 {offsets = [16, 0], sizes = [32, 128], strides = [1, 1]} : vector<64x128xf32> to vector<32x128xf32>
    %c15 = arith.constant 15 : index
    %c0_25 = arith.constant 0 : index
    %65 = vector.load %arg9[%c15, %c0_25] : memref<31x128xf32, #tpu.memory_space<vmem>>, vector<1x128xf32>
    %66 = vector.broadcast %65 : vector<1x128xf32> to vector<32x128xf32>
    %67 = arith.mulf %64, %66 : vector<32x128xf32>
    %68 = arith.addf %63, %67 : vector<32x128xf32>
    %69 = vector.extract_strided_slice %59 {offsets = [24, 0], sizes = [32, 128], strides = [1, 1]} : vector<64x128xf32> to vector<32x128xf32>
    %c23 = arith.constant 23 : index
    %c0_26 = arith.constant 0 : index
    %70 = vector.load %arg9[%c23, %c0_26] : memref<31x128xf32, #tpu.memory_space<vmem>>, vector<1x128xf32>
    %71 = vector.broadcast %70 : vector<1x128xf32> to vector<32x128xf32>
    %72 = arith.mulf %69, %71 : vector<32x128xf32>
    %73 = arith.addf %68, %72 : vector<32x128xf32>
    %74 = vector.extract_strided_slice %59 {offsets = [1, 0], sizes = [63, 128], strides = [1, 1]} : vector<64x128xf32> to vector<63x128xf32>
    %75 = vector.extract_strided_slice %74 {offsets = [0, 0], sizes = [32, 128], strides = [1, 1]} : vector<63x128xf32> to vector<32x128xf32>
    %c0_27 = arith.constant 0 : index
    %c0_28 = arith.constant 0 : index
    %76 = vector.load %arg9[%c0_27, %c0_28] : memref<31x128xf32, #tpu.memory_space<vmem>>, vector<1x128xf32>
    %77 = vector.broadcast %76 : vector<1x128xf32> to vector<32x128xf32>
    %78 = arith.mulf %75, %77 : vector<32x128xf32>
    %79 = arith.addf %73, %78 : vector<32x128xf32>
    %80 = vector.extract_strided_slice %74 {offsets = [8, 0], sizes = [32, 128], strides = [1, 1]} : vector<63x128xf32> to vector<32x128xf32>
    %c8 = arith.constant 8 : index
    %c0_29 = arith.constant 0 : index
    %81 = vector.load %arg9[%c8, %c0_29] : memref<31x128xf32, #tpu.memory_space<vmem>>, vector<1x128xf32>
    %82 = vector.broadcast %81 : vector<1x128xf32> to vector<32x128xf32>
    %83 = arith.mulf %80, %82 : vector<32x128xf32>
    %84 = arith.addf %79, %83 : vector<32x128xf32>
    %85 = vector.extract_strided_slice %74 {offsets = [16, 0], sizes = [32, 128], strides = [1, 1]} : vector<63x128xf32> to vector<32x128xf32>
    %c16 = arith.constant 16 : index
    %c0_30 = arith.constant 0 : index
    %86 = vector.load %arg9[%c16, %c0_30] : memref<31x128xf32, #tpu.memory_space<vmem>>, vector<1x128xf32>
    %87 = vector.broadcast %86 : vector<1x128xf32> to vector<32x128xf32>
    %88 = arith.mulf %85, %87 : vector<32x128xf32>
    %89 = arith.addf %84, %88 : vector<32x128xf32>
    %90 = vector.extract_strided_slice %74 {offsets = [24, 0], sizes = [32, 128], strides = [1, 1]} : vector<63x128xf32> to vector<32x128xf32>
    %c24 = arith.constant 24 : index
    %c0_31 = arith.constant 0 : index
    %91 = vector.load %arg9[%c24, %c0_31] : memref<31x128xf32, #tpu.memory_space<vmem>>, vector<1x128xf32>
    %92 = vector.broadcast %91 : vector<1x128xf32> to vector<32x128xf32>
    %93 = arith.mulf %90, %92 : vector<32x128xf32>
    %94 = arith.addf %89, %93 : vector<32x128xf32>
    %95 = vector.extract_strided_slice %59 {offsets = [2, 0], sizes = [62, 128], strides = [1, 1]} : vector<64x128xf32> to vector<62x128xf32>
    %96 = vector.extract_strided_slice %95 {offsets = [0, 0], sizes = [32, 128], strides = [1, 1]} : vector<62x128xf32> to vector<32x128xf32>
    %c1 = arith.constant 1 : index
    %c0_32 = arith.constant 0 : index
    %97 = vector.load %arg9[%c1, %c0_32] : memref<31x128xf32, #tpu.memory_space<vmem>>, vector<1x128xf32>
    %98 = vector.broadcast %97 : vector<1x128xf32> to vector<32x128xf32>
    %99 = arith.mulf %96, %98 : vector<32x128xf32>
    %100 = arith.addf %94, %99 : vector<32x128xf32>
    %101 = vector.extract_strided_slice %95 {offsets = [8, 0], sizes = [32, 128], strides = [1, 1]} : vector<62x128xf32> to vector<32x128xf32>
    %c9 = arith.constant 9 : index
    %c0_33 = arith.constant 0 : index
    %102 = vector.load %arg9[%c9, %c0_33] : memref<31x128xf32, #tpu.memory_space<vmem>>, vector<1x128xf32>
    %103 = vector.broadcast %102 : vector<1x128xf32> to vector<32x128xf32>
    %104 = arith.mulf %101, %103 : vector<32x128xf32>
    %105 = arith.addf %100, %104 : vector<32x128xf32>
    %106 = vector.extract_strided_slice %95 {offsets = [16, 0], sizes = [32, 128], strides = [1, 1]} : vector<62x128xf32> to vector<32x128xf32>
    %c17 = arith.constant 17 : index
    %c0_34 = arith.constant 0 : index
    %107 = vector.load %arg9[%c17, %c0_34] : memref<31x128xf32, #tpu.memory_space<vmem>>, vector<1x128xf32>
    %108 = vector.broadcast %107 : vector<1x128xf32> to vector<32x128xf32>
    %109 = arith.mulf %106, %108 : vector<32x128xf32>
    %110 = arith.addf %105, %109 : vector<32x128xf32>
    %111 = vector.extract_strided_slice %95 {offsets = [24, 0], sizes = [32, 128], strides = [1, 1]} : vector<62x128xf32> to vector<32x128xf32>
    %c25 = arith.constant 25 : index
    %c0_35 = arith.constant 0 : index
    %112 = vector.load %arg9[%c25, %c0_35] : memref<31x128xf32, #tpu.memory_space<vmem>>, vector<1x128xf32>
    %113 = vector.broadcast %112 : vector<1x128xf32> to vector<32x128xf32>
    %114 = arith.mulf %111, %113 : vector<32x128xf32>
    %115 = arith.addf %110, %114 : vector<32x128xf32>
    %116 = vector.extract_strided_slice %59 {offsets = [3, 0], sizes = [61, 128], strides = [1, 1]} : vector<64x128xf32> to vector<61x128xf32>
    %117 = vector.extract_strided_slice %116 {offsets = [0, 0], sizes = [32, 128], strides = [1, 1]} : vector<61x128xf32> to vector<32x128xf32>
    %c2 = arith.constant 2 : index
    %c0_36 = arith.constant 0 : index
    %118 = vector.load %arg9[%c2, %c0_36] : memref<31x128xf32, #tpu.memory_space<vmem>>, vector<1x128xf32>
    %119 = vector.broadcast %118 : vector<1x128xf32> to vector<32x128xf32>
    %120 = arith.mulf %117, %119 : vector<32x128xf32>
    %121 = arith.addf %115, %120 : vector<32x128xf32>
    %122 = vector.extract_strided_slice %116 {offsets = [8, 0], sizes = [32, 128], strides = [1, 1]} : vector<61x128xf32> to vector<32x128xf32>
    %c10 = arith.constant 10 : index
    %c0_37 = arith.constant 0 : index
    %123 = vector.load %arg9[%c10, %c0_37] : memref<31x128xf32, #tpu.memory_space<vmem>>, vector<1x128xf32>
    %124 = vector.broadcast %123 : vector<1x128xf32> to vector<32x128xf32>
    %125 = arith.mulf %122, %124 : vector<32x128xf32>
    %126 = arith.addf %121, %125 : vector<32x128xf32>
    %127 = vector.extract_strided_slice %116 {offsets = [16, 0], sizes = [32, 128], strides = [1, 1]} : vector<61x128xf32> to vector<32x128xf32>
    %c18 = arith.constant 18 : index
    %c0_38 = arith.constant 0 : index
    %128 = vector.load %arg9[%c18, %c0_38] : memref<31x128xf32, #tpu.memory_space<vmem>>, vector<1x128xf32>
    %129 = vector.broadcast %128 : vector<1x128xf32> to vector<32x128xf32>
    %130 = arith.mulf %127, %129 : vector<32x128xf32>
    %131 = arith.addf %126, %130 : vector<32x128xf32>
    %132 = vector.extract_strided_slice %116 {offsets = [24, 0], sizes = [32, 128], strides = [1, 1]} : vector<61x128xf32> to vector<32x128xf32>
    %c26 = arith.constant 26 : index
    %c0_39 = arith.constant 0 : index
    %133 = vector.load %arg9[%c26, %c0_39] : memref<31x128xf32, #tpu.memory_space<vmem>>, vector<1x128xf32>
    %134 = vector.broadcast %133 : vector<1x128xf32> to vector<32x128xf32>
    %135 = arith.mulf %132, %134 : vector<32x128xf32>
    %136 = arith.addf %131, %135 : vector<32x128xf32>
    %137 = vector.extract_strided_slice %59 {offsets = [4, 0], sizes = [60, 128], strides = [1, 1]} : vector<64x128xf32> to vector<60x128xf32>
    %138 = vector.extract_strided_slice %137 {offsets = [0, 0], sizes = [32, 128], strides = [1, 1]} : vector<60x128xf32> to vector<32x128xf32>
    %c3 = arith.constant 3 : index
    %c0_40 = arith.constant 0 : index
    %139 = vector.load %arg9[%c3, %c0_40] : memref<31x128xf32, #tpu.memory_space<vmem>>, vector<1x128xf32>
    %140 = vector.broadcast %139 : vector<1x128xf32> to vector<32x128xf32>
    %141 = arith.mulf %138, %140 : vector<32x128xf32>
    %142 = arith.addf %136, %141 : vector<32x128xf32>
    %143 = vector.extract_strided_slice %137 {offsets = [8, 0], sizes = [32, 128], strides = [1, 1]} : vector<60x128xf32> to vector<32x128xf32>
    %c11 = arith.constant 11 : index
    %c0_41 = arith.constant 0 : index
    %144 = vector.load %arg9[%c11, %c0_41] : memref<31x128xf32, #tpu.memory_space<vmem>>, vector<1x128xf32>
    %145 = vector.broadcast %144 : vector<1x128xf32> to vector<32x128xf32>
    %146 = arith.mulf %143, %145 : vector<32x128xf32>
    %147 = arith.addf %142, %146 : vector<32x128xf32>
    %148 = vector.extract_strided_slice %137 {offsets = [16, 0], sizes = [32, 128], strides = [1, 1]} : vector<60x128xf32> to vector<32x128xf32>
    %c19 = arith.constant 19 : index
    %c0_42 = arith.constant 0 : index
    %149 = vector.load %arg9[%c19, %c0_42] : memref<31x128xf32, #tpu.memory_space<vmem>>, vector<1x128xf32>
    %150 = vector.broadcast %149 : vector<1x128xf32> to vector<32x128xf32>
    %151 = arith.mulf %148, %150 : vector<32x128xf32>
    %152 = arith.addf %147, %151 : vector<32x128xf32>
    %153 = vector.extract_strided_slice %137 {offsets = [24, 0], sizes = [32, 128], strides = [1, 1]} : vector<60x128xf32> to vector<32x128xf32>
    %c27 = arith.constant 27 : index
    %c0_43 = arith.constant 0 : index
    %154 = vector.load %arg9[%c27, %c0_43] : memref<31x128xf32, #tpu.memory_space<vmem>>, vector<1x128xf32>
    %155 = vector.broadcast %154 : vector<1x128xf32> to vector<32x128xf32>
    %156 = arith.mulf %153, %155 : vector<32x128xf32>
    %157 = arith.addf %152, %156 : vector<32x128xf32>
    %158 = vector.extract_strided_slice %59 {offsets = [5, 0], sizes = [59, 128], strides = [1, 1]} : vector<64x128xf32> to vector<59x128xf32>
    %159 = vector.extract_strided_slice %158 {offsets = [0, 0], sizes = [32, 128], strides = [1, 1]} : vector<59x128xf32> to vector<32x128xf32>
    %c4 = arith.constant 4 : index
    %c0_44 = arith.constant 0 : index
    %160 = vector.load %arg9[%c4, %c0_44] : memref<31x128xf32, #tpu.memory_space<vmem>>, vector<1x128xf32>
    %161 = vector.broadcast %160 : vector<1x128xf32> to vector<32x128xf32>
    %162 = arith.mulf %159, %161 : vector<32x128xf32>
    %163 = arith.addf %157, %162 : vector<32x128xf32>
    %164 = vector.extract_strided_slice %158 {offsets = [8, 0], sizes = [32, 128], strides = [1, 1]} : vector<59x128xf32> to vector<32x128xf32>
    %c12 = arith.constant 12 : index
    %c0_45 = arith.constant 0 : index
    %165 = vector.load %arg9[%c12, %c0_45] : memref<31x128xf32, #tpu.memory_space<vmem>>, vector<1x128xf32>
    %166 = vector.broadcast %165 : vector<1x128xf32> to vector<32x128xf32>
    %167 = arith.mulf %164, %166 : vector<32x128xf32>
    %168 = arith.addf %163, %167 : vector<32x128xf32>
    %169 = vector.extract_strided_slice %158 {offsets = [16, 0], sizes = [32, 128], strides = [1, 1]} : vector<59x128xf32> to vector<32x128xf32>
    %c20 = arith.constant 20 : index
    %c0_46 = arith.constant 0 : index
    %170 = vector.load %arg9[%c20, %c0_46] : memref<31x128xf32, #tpu.memory_space<vmem>>, vector<1x128xf32>
    %171 = vector.broadcast %170 : vector<1x128xf32> to vector<32x128xf32>
    %172 = arith.mulf %169, %171 : vector<32x128xf32>
    %173 = arith.addf %168, %172 : vector<32x128xf32>
    %174 = vector.extract_strided_slice %158 {offsets = [24, 0], sizes = [32, 128], strides = [1, 1]} : vector<59x128xf32> to vector<32x128xf32>
    %c28 = arith.constant 28 : index
    %c0_47 = arith.constant 0 : index
    %175 = vector.load %arg9[%c28, %c0_47] : memref<31x128xf32, #tpu.memory_space<vmem>>, vector<1x128xf32>
    %176 = vector.broadcast %175 : vector<1x128xf32> to vector<32x128xf32>
    %177 = arith.mulf %174, %176 : vector<32x128xf32>
    %178 = arith.addf %173, %177 : vector<32x128xf32>
    %179 = vector.extract_strided_slice %59 {offsets = [6, 0], sizes = [58, 128], strides = [1, 1]} : vector<64x128xf32> to vector<58x128xf32>
    %180 = vector.extract_strided_slice %179 {offsets = [0, 0], sizes = [32, 128], strides = [1, 1]} : vector<58x128xf32> to vector<32x128xf32>
    %c5 = arith.constant 5 : index
    %c0_48 = arith.constant 0 : index
    %181 = vector.load %arg9[%c5, %c0_48] : memref<31x128xf32, #tpu.memory_space<vmem>>, vector<1x128xf32>
    %182 = vector.broadcast %181 : vector<1x128xf32> to vector<32x128xf32>
    %183 = arith.mulf %180, %182 : vector<32x128xf32>
    %184 = arith.addf %178, %183 : vector<32x128xf32>
    %185 = vector.extract_strided_slice %179 {offsets = [8, 0], sizes = [32, 128], strides = [1, 1]} : vector<58x128xf32> to vector<32x128xf32>
    %c13 = arith.constant 13 : index
    %c0_49 = arith.constant 0 : index
    %186 = vector.load %arg9[%c13, %c0_49] : memref<31x128xf32, #tpu.memory_space<vmem>>, vector<1x128xf32>
    %187 = vector.broadcast %186 : vector<1x128xf32> to vector<32x128xf32>
    %188 = arith.mulf %185, %187 : vector<32x128xf32>
    %189 = arith.addf %184, %188 : vector<32x128xf32>
    %190 = vector.extract_strided_slice %179 {offsets = [16, 0], sizes = [32, 128], strides = [1, 1]} : vector<58x128xf32> to vector<32x128xf32>
    %c21 = arith.constant 21 : index
    %c0_50 = arith.constant 0 : index
    %191 = vector.load %arg9[%c21, %c0_50] : memref<31x128xf32, #tpu.memory_space<vmem>>, vector<1x128xf32>
    %192 = vector.broadcast %191 : vector<1x128xf32> to vector<32x128xf32>
    %193 = arith.mulf %190, %192 : vector<32x128xf32>
    %194 = arith.addf %189, %193 : vector<32x128xf32>
    %195 = vector.extract_strided_slice %179 {offsets = [24, 0], sizes = [32, 128], strides = [1, 1]} : vector<58x128xf32> to vector<32x128xf32>
    %c29 = arith.constant 29 : index
    %c0_51 = arith.constant 0 : index
    %196 = vector.load %arg9[%c29, %c0_51] : memref<31x128xf32, #tpu.memory_space<vmem>>, vector<1x128xf32>
    %197 = vector.broadcast %196 : vector<1x128xf32> to vector<32x128xf32>
    %198 = arith.mulf %195, %197 : vector<32x128xf32>
    %199 = arith.addf %194, %198 : vector<32x128xf32>
    %200 = vector.extract_strided_slice %59 {offsets = [7, 0], sizes = [57, 128], strides = [1, 1]} : vector<64x128xf32> to vector<57x128xf32>
    %201 = vector.extract_strided_slice %200 {offsets = [0, 0], sizes = [32, 128], strides = [1, 1]} : vector<57x128xf32> to vector<32x128xf32>
    %c6 = arith.constant 6 : index
    %c0_52 = arith.constant 0 : index
    %202 = vector.load %arg9[%c6, %c0_52] : memref<31x128xf32, #tpu.memory_space<vmem>>, vector<1x128xf32>
    %203 = vector.broadcast %202 : vector<1x128xf32> to vector<32x128xf32>
    %204 = arith.mulf %201, %203 : vector<32x128xf32>
    %205 = arith.addf %199, %204 : vector<32x128xf32>
    %206 = vector.extract_strided_slice %200 {offsets = [8, 0], sizes = [32, 128], strides = [1, 1]} : vector<57x128xf32> to vector<32x128xf32>
    %c14 = arith.constant 14 : index
    %c0_53 = arith.constant 0 : index
    %207 = vector.load %arg9[%c14, %c0_53] : memref<31x128xf32, #tpu.memory_space<vmem>>, vector<1x128xf32>
    %208 = vector.broadcast %207 : vector<1x128xf32> to vector<32x128xf32>
    %209 = arith.mulf %206, %208 : vector<32x128xf32>
    %210 = arith.addf %205, %209 : vector<32x128xf32>
    %211 = vector.extract_strided_slice %200 {offsets = [16, 0], sizes = [32, 128], strides = [1, 1]} : vector<57x128xf32> to vector<32x128xf32>
    %c22 = arith.constant 22 : index
    %c0_54 = arith.constant 0 : index
    %212 = vector.load %arg9[%c22, %c0_54] : memref<31x128xf32, #tpu.memory_space<vmem>>, vector<1x128xf32>
    %213 = vector.broadcast %212 : vector<1x128xf32> to vector<32x128xf32>
    %214 = arith.mulf %211, %213 : vector<32x128xf32>
    %215 = arith.addf %210, %214 : vector<32x128xf32>
    %216 = vector.extract_strided_slice %200 {offsets = [24, 0], sizes = [32, 128], strides = [1, 1]} : vector<57x128xf32> to vector<32x128xf32>
    %c30 = arith.constant 30 : index
    %c0_55 = arith.constant 0 : index
    %217 = vector.load %arg9[%c30, %c0_55] : memref<31x128xf32, #tpu.memory_space<vmem>>, vector<1x128xf32>
    %218 = vector.broadcast %217 : vector<1x128xf32> to vector<32x128xf32>
    %219 = arith.mulf %216, %218 : vector<32x128xf32>
    %220 = arith.addf %215, %219 : vector<32x128xf32>
    %c0_56 = arith.constant 0 : index
    %c0_57 = arith.constant 0 : index
    %221 = vector.load %arg10[%c0_56, %c0_57] : memref<1x128xf32, #tpu.memory_space<vmem>>, vector<1x128xf32>
    %222 = vector.broadcast %221 : vector<1x128xf32> to vector<32x128xf32>
    %223 = arith.mulf %220, %222 : vector<32x128xf32>
    %c0_58 = arith.constant 0 : index
    %c0_59 = arith.constant 0 : index
    %224 = vector.load %arg11[%c0_58, %c0_59] : memref<1x128xf32, #tpu.memory_space<vmem>>, vector<1x128xf32>
    %225 = vector.broadcast %224 : vector<1x128xf32> to vector<32x128xf32>
    %226 = arith.addf %223, %225 : vector<32x128xf32>
    %cst_60 = arith.constant 0.000000e+00 : f32
    %227 = vector.broadcast %cst_60 : f32 to vector<32x128xf32>
    %228 = arith.subf %227, %226 : vector<32x128xf32>
    %229 = math.exp %228 : vector<32x128xf32>
    %cst_61 = arith.constant 1.000000e+00 : f32
    %230 = vector.broadcast %cst_61 : f32 to vector<32x128xf32>
    %231 = arith.addf %230, %229 : vector<32x128xf32>
    %232 = tpu.reciprocal %231 {approx = true} : vector<32x128xf32> -> vector<32x128xf32>
    %233 = arith.mulf %226, %232 : vector<32x128xf32>
    %234 = arith.truncf %233 : vector<32x128xf32> to vector<32x128xbf16>
    %c0_62 = arith.constant 0 : index
    %c0_63 = arith.constant 0 : index
    %235 = vector.load %arg12[%c0_62, %c0_63] : memref<128x128xbf16, #tpu.memory_space<vmem>>, vector<128x128xbf16>
    %cst_64 = arith.constant dense<0.000000e+00> : vector<32x128xf32>
    %236 = tpu.matmul %234, %235, %cst_64 {dimension_numbers = #tpu.dot_dimension_numbers<[1], [0], [0], [1], [0, 0, 1, 1], [], []>} : vector<32x128xbf16>, vector<128x128xbf16>, vector<32x128xf32> -> vector<32x128xf32>
    %c0_65 = arith.constant 0 : index
    %c0_66 = arith.constant 0 : index
    %237 = vector.load %arg13[%c0_65, %c0_66] : memref<1x128xf32, #tpu.memory_space<vmem>>, vector<1x128xf32>
    %238 = vector.broadcast %237 : vector<1x128xf32> to vector<32x128xf32>
    %239 = arith.addf %236, %238 : vector<32x128xf32>
    %c0_67 = arith.constant 0 : index
    %c0_68 = arith.constant 0 : index
    %c0_69 = arith.constant 0 : index
    %240 = vector.load %arg14[%c0_67, %c0_68, %c0_69] : memref<1x32x128xf32, #tpu.memory_space<vmem>>, vector<1x32x128xf32>
    %241 = vector.shape_cast %240 : vector<1x32x128xf32> to vector<32x128xf32>
    %242 = vector.shape_cast %239 : vector<32x128xf32> to vector<1x32x128xf32>
    tpu.vector_store %arg14[%c0_67, %c0_68, %c0_69], %242 {strides = array<i32>} : memref<1x32x128xf32, #tpu.memory_space<vmem>>, vector<1x32x128xf32>,
    return
  }
  func.func @transform_0(%arg0: i32, %arg1: i32) -> (i32, i32, i32) {
    %c0_i32 = arith.constant 0 : i32
    %c0_i32_0 = arith.constant 0 : i32
    return %arg0, %arg1, %c0_i32 : i32, i32, i32
  }
  func.func @transform_1(%arg0: i32, %arg1: i32) -> (i32, i32, i32) {
    %c2_i32 = arith.constant 2 : i32
    %0 = arith.muli %arg1, %c2_i32 : i32
    %c1_i32 = arith.constant 1 : i32
    %1 = arith.subi %0, %c1_i32 : i32
    %c0_i32 = arith.constant 0 : i32
    %2 = arith.maxsi %1, %c0_i32 : i32
    %c0_i32_0 = arith.constant 0 : i32
    %c0_i32_1 = arith.constant 0 : i32
    return %arg0, %2, %c0_i32_0 : i32, i32, i32
  }
  func.func @transform_2(%arg0: i32, %arg1: i32) -> (i32, i32, i32) {
    %c2_i32 = arith.constant 2 : i32
    %0 = arith.muli %arg1, %c2_i32 : i32
    %c2_i32_0 = arith.constant 2 : i32
    %1 = arith.addi %0, %c2_i32_0 : i32
    %c5_i32 = arith.constant 5 : i32
    %2 = arith.minsi %1, %c5_i32 : i32
    %c0_i32 = arith.constant 0 : i32
    %c0_i32_1 = arith.constant 0 : i32
    return %arg0, %2, %c0_i32 : i32, i32, i32
  }
  func.func @transform_3(%arg0: i32, %arg1: i32) -> (i32, i32) {
    %c0_i32 = arith.constant 0 : i32
    %c0_i32_0 = arith.constant 0 : i32
    %c0_i32_1 = arith.constant 0 : i32
    return %c0_i32, %c0_i32_0 : i32, i32
  }
  func.func @transform_4(%arg0: i32, %arg1: i32) -> (i32, i32) {
    %c0_i32 = arith.constant 0 : i32
    %c0_i32_0 = arith.constant 0 : i32
    %c0_i32_1 = arith.constant 0 : i32
    return %c0_i32, %c0_i32_0 : i32, i32
  }
  func.func @transform_5(%arg0: i32, %arg1: i32) -> (i32, i32) {
    %c0_i32 = arith.constant 0 : i32
    %c0_i32_0 = arith.constant 0 : i32
    %c0_i32_1 = arith.constant 0 : i32
    return %c0_i32, %c0_i32_0 : i32, i32
  }
  func.func @transform_6(%arg0: i32, %arg1: i32) -> (i32, i32) {
    %c0_i32 = arith.constant 0 : i32
    %c0_i32_0 = arith.constant 0 : i32
    %c0_i32_1 = arith.constant 0 : i32
    return %c0_i32, %c0_i32_0 : i32, i32
  }
  func.func @transform_7(%arg0: i32, %arg1: i32) -> (i32, i32) {
    %c0_i32 = arith.constant 0 : i32
    %c0_i32_0 = arith.constant 0 : i32
    %c0_i32_1 = arith.constant 0 : i32
    return %c0_i32, %c0_i32_0 : i32, i32
  }
  func.func @transform_8(%arg0: i32, %arg1: i32) -> (i32, i32) {
    %c0_i32 = arith.constant 0 : i32
    %c0_i32_0 = arith.constant 0 : i32
    %c0_i32_1 = arith.constant 0 : i32
    return %c0_i32, %c0_i32_0 : i32, i32
  }
  func.func @transform_9(%arg0: i32, %arg1: i32) -> (i32, i32) {
    %c0_i32 = arith.constant 0 : i32
    %c0_i32_0 = arith.constant 0 : i32
    %c0_i32_1 = arith.constant 0 : i32
    return %c0_i32, %c0_i32_0 : i32, i32
  }
  func.func @transform_10(%arg0: i32, %arg1: i32) -> (i32, i32) {
    %c0_i32 = arith.constant 0 : i32
    %c0_i32_0 = arith.constant 0 : i32
    %c0_i32_1 = arith.constant 0 : i32
    return %c0_i32, %c0_i32_0 : i32, i32
  }
  func.func @transform_11(%arg0: i32, %arg1: i32) -> (i32, i32) {
    %c0_i32 = arith.constant 0 : i32
    %c0_i32_0 = arith.constant 0 : i32
    %c0_i32_1 = arith.constant 0 : i32
    return %c0_i32, %c0_i32_0 : i32, i32
  }
  func.func @transform_12(%arg0: i32, %arg1: i32) -> (i32, i32, i32) {
    %c0_i32 = arith.constant 0 : i32
    %c0_i32_0 = arith.constant 0 : i32
    return %arg0, %arg1, %c0_i32 : i32, i32, i32
  }
}

</mosaic_0001>

<llo_original>
// kernel: berp_conv_block.1
$region0: #{berp_conv_block.1}
  #allocation0 [shape = 'u32[]', space=smem, size = 0x4, offset = 0x4, fixed_abs, tag = 'smem constant byte address 0x4 - core index']
  #allocation1 [shape = 'u32[72,128]{1,0:T(1,128)}', space=vmem, size = 0x9000, scoped, tag = 'internal scratch']
  %s0 = inlined_call_operand.vmem [shape: f32[2,96,128], index: 0, kind: input, shape index: {}, may-alias: {0,1,2}]
  %s1 = inlined_call_operand.vmem [shape: f32[2,96,128], index: 1, kind: input, shape index: {}, may-alias: {0,1,2}]
  %s2 = inlined_call_operand.vmem [shape: f32[2,96,128], index: 2, kind: input, shape index: {}, may-alias: {0,1,2}]
  %s3 = inlined_call_operand.vmem [shape: f32[1,128], index: 3, kind: input, shape index: {}]
  %s4 = inlined_call_operand.vmem [shape: f32[1,128], index: 4, kind: input, shape index: {}]
  %s5 = inlined_call_operand.vmem [shape: bf16[128,256], index: 5, kind: input, shape index: {}]
  %s6 = inlined_call_operand.vmem [shape: f32[1,256], index: 6, kind: input, shape index: {}]
  %s7 = inlined_call_operand.vmem [shape: f32[31,128], index: 7, kind: input, shape index: {}]
  %s8 = inlined_call_operand.vmem [shape: f32[1,128], index: 8, kind: input, shape index: {}]
  %s9 = inlined_call_operand.vmem [shape: f32[1,128], index: 9, kind: input, shape index: {}]
  %s10 = inlined_call_operand.vmem [shape: bf16[128,128], index: 10, kind: input, shape index: {}]
  %s11 = inlined_call_operand.vmem [shape: f32[1,128], index: 11, kind: input, shape index: {}]
  %s12 = inlined_call_operand.vmem [shape: f32[2,96,128], index: 12, kind: output, shape index: {}]
  %s13 = sld [smem:[#allocation0]]
  $region81: #{berp_conv_block.1} parent=0
    _
  %s15 = ssub.s32 1, %s13
  %s16 = scalar_select 0, %s15, %s13
  loop: start=0, step=1, limit=8
  $region2: #{berp_conv_block.1} parent=0 // loop_pre_header
    _
  $region3: #{berp_conv_block.1} parent=0 // loop_header
    %s18 = sphi 0, %s22
    %p19 = scmp.ge.s32.totalorder %s18, 8
    %s25 = sphi 0, %s37
    %s26 = sphi 0, %s33
    %s27 = sphi 0, %s25
    %s28 = sphi 0, %s26
    %s29 = sphi 0, %s27
    %s30 = sphi 0, %s28
    %s42 = sphi 0, %s44
    %s45 = sphi 0, %s42
    %s46 = sphi 0, %s45
    %s62 = sphi 0, %s46
    %s78 = sphi 0, %s80
    %s81 = sphi 0, %s78
    %s82 = sphi 0, %s81
    %s98 = sphi 0, %s82
    %s114 = sphi 0, %s116
    %s117 = sphi 0, %s114
    %s118 = sphi 0, %s117
    %s134 = sphi 0, %s118
    %s138 = sphi 0, %s138
    %s140 = sphi 0, %s138
    %s141 = sphi 0, %s140
    %s155 = sphi 0, %s141
    %s159 = sphi 0, %s159
    %s161 = sphi 0, %s159
    %s162 = sphi 0, %s161
    %s176 = sphi 0, %s162
    %s180 = sphi 0, %s180
    %s182 = sphi 0, %s180
    %s183 = sphi 0, %s182
    %s197 = sphi 0, %s183
    %s201 = sphi 0, %s201
    %s203 = sphi 0, %s201
    %s204 = sphi 0, %s203
    %s218 = sphi 0, %s204
    %s222 = sphi 0, %s222
    %s224 = sphi 0, %s222
    %s225 = sphi 0, %s224
    %s239 = sphi 0, %s225
    %s243 = sphi 0, %s243
    %s245 = sphi 0, %s243
    %s246 = sphi 0, %s245
    %s260 = sphi 0, %s246
    %s264 = sphi 0, %s264
    %s266 = sphi 0, %s264
    %s267 = sphi 0, %s266
    %s281 = sphi 0, %s267
    %s285 = sphi 0, %s285
    %s287 = sphi 0, %s285
    %s288 = sphi 0, %s287
    %s302 = sphi 0, %s288
    %s306 = sphi 0, %s306
    %s308 = sphi 0, %s306
    %s309 = sphi 0, %s308
    %s323 = sphi 0, %s309
    %s331 = sphi 0, %s333
    %s334 = sphi 0, %s331
    %s335 = sphi 0, %s334
    %s351 = sphi 0, %s335
  $region4: #{berp_conv_block.1} parent=0 // loop_header_branch
    %21 = sbr.rel (%p19) target = $region8
  $region5: #{berp_conv_block.1} parent=0 // loop_body
    %s23 = ssub.s32 %s18, 1
    %s24 = ssub.s32 %s18, 2
    %s31 = sadd.s32 1, %s26
    %p32 = scmp.ge.s32.totalorder %s31, 3
    %s33 = scalar_select %p32, 0, %s31
    %s34 = sadd.s32 1, %s25
    %s35 = scalar_select %p32, %s34, %s25
    %p36 = scmp.ge.s32.totalorder %s35, 2
    %s37 = scalar_select %p36, 0, %s35
    %s38 = ssub.s32 %s25, %s37
    %s39 = ssub.s32 %s26, %s33
    %s40 = sor.u32 %s38, %s39
    %p41 = scmp.eq.s32.totalorder %s40, 0
    %s43 = sadd.s32 %s42, 1
    %s44 = scalar_select %p41, %s42, %s43
    %p47 = pneg %p41
    %p48 = scmp.eq.s32.totalorder %s18, 5
    %p49 = por %p47, %p48
    %p50 = scmp.ne.s32.totalorder %s42, %s45
    %p51 = scmp.eq.s32.totalorder %s18, 0
    %p52 = por %p50, %p51
    %p53 = scmp.ne.s32.totalorder %s42, %s45
    %p54 = scmp.eq.s32.totalorder %s23, 5
    %p55 = por %p53, %p54
    %p56 = scmp.ne.s32.totalorder %s45, %s46
    %p57 = scmp.eq.s32.totalorder %s23, 0
    %p58 = por %p56, %p57
    %p59 = scmp.ne.s32.totalorder %s45, %s46
    %p60 = scmp.eq.s32.totalorder %s24, 5
    %p61 = por %p59, %p60
    %p63 = scmp.ne.s32.totalorder %s46, %s62
    %p64 = scmp.eq.s32.totalorder %s24, 0
    %p65 = por %p63, %p64
    %s66 = smul.u32 %s26, 2
    %s67 = ssub.s32 %s66, 1
    %p68 = scmp.gt.s32.totalorder %s67, 0
    %s69 = scalar_select %p68, %s67, 0
    %s70 = smul.u32 %s33, 2
    %s71 = ssub.s32 %s70, 1
    %p72 = scmp.gt.s32.totalorder %s71, 0
    %s73 = scalar_select %p72, %s71, 0
    %s74 = ssub.s32 %s25, %s37
    %s75 = ssub.s32 %s69, %s73
    %s76 = sor.u32 %s74, %s75
    %p77 = scmp.eq.s32.totalorder %s76, 0
    %s79 = sadd.s32 %s78, 1
    %s80 = scalar_select %p77, %s78, %s79
    %p83 = pneg %p77
    %p84 = scmp.eq.s32.totalorder %s18, 5
    %p85 = por %p83, %p84
    %p86 = scmp.ne.s32.totalorder %s78, %s81
    %p87 = scmp.eq.s32.totalorder %s18, 0
    %p88 = por %p86, %p87
    %p89 = scmp.ne.s32.totalorder %s78, %s81
    %p90 = scmp.eq.s32.totalorder %s23, 5
    %p91 = por %p89, %p90
    %p92 = scmp.ne.s32.totalorder %s81, %s82
    %p93 = scmp.eq.s32.totalorder %s23, 0
    %p94 = por %p92, %p93
    %p95 = scmp.ne.s32.totalorder %s81, %s82
    %p96 = scmp.eq.s32.totalorder %s24, 5
    %p97 = por %p95, %p96
    %p99 = scmp.ne.s32.totalorder %s82, %s98
    %p100 = scmp.eq.s32.totalorder %s24, 0
    %p101 = por %p99, %p100
    %s102 = smul.u32 %s26, 2
    %s103 = sadd.s32 %s102, 2
    %p104 = scmp.lt.s32.totalorder %s103, 5
    %s105 = scalar_select %p104, %s103, 5
    %s106 = smul.u32 %s33, 2
    %s107 = sadd.s32 %s106, 2
    %p108 = scmp.lt.s32.totalorder %s107, 5
    %s109 = scalar_select %p108, %s107, 5
    %s110 = ssub.s32 %s25, %s37
    %s111 = ssub.s32 %s105, %s109
    %s112 = sor.u32 %s110, %s111
    %p113 = scmp.eq.s32.totalorder %s112, 0
    %s115 = sadd.s32 %s114, 1
    %s116 = scalar_select %p113, %s114, %s115
    %p119 = pneg %p113
    %p120 = scmp.eq.s32.totalorder %s18, 5
    %p121 = por %p119, %p120
    %p122 = scmp.ne.s32.totalorder %s114, %s117
    %p123 = scmp.eq.s32.totalorder %s18, 0
    %p124 = por %p122, %p123
    %p125 = scmp.ne.s32.totalorder %s114, %s117
    %p126 = scmp.eq.s32.totalorder %s23, 5
    %p127 = por %p125, %p126
    %p128 = scmp.ne.s32.totalorder %s117, %s118
    %p129 = scmp.eq.s32.totalorder %s23, 0
    %p130 = por %p128, %p129
    %p131 = scmp.ne.s32.totalorder %s117, %s118
    %p132 = scmp.eq.s32.totalorder %s24, 5
    %p133 = por %p131, %p132
    %p135 = scmp.ne.s32.totalorder %s118, %s134
    %p136 = scmp.eq.s32.totalorder %s24, 0
    %p137 = por %p135, %p136
    %s139 = sadd.s32 %s138, 1
    %p142 = scmp.eq.s32.totalorder %s18, 5
    %p143 = scmp.ne.s32.totalorder %s138, %s140
    %p144 = scmp.eq.s32.totalorder %s18, 0
    %p145 = por %p143, %p144
    %p146 = scmp.ne.s32.totalorder %s138, %s140
    %p147 = scmp.eq.s32.totalorder %s23, 5
    %p148 = por %p146, %p147
    %p149 = scmp.ne.s32.totalorder %s140, %s141
    %p150 = scmp.eq.s32.totalorder %s23, 0
    %p151 = por %p149, %p150
    %p152 = scmp.ne.s32.totalorder %s140, %s141
    %p153 = scmp.eq.s32.totalorder %s24, 5
    %p154 = por %p152, %p153
    %p156 = scmp.ne.s32.totalorder %s141, %s155
    %p157 = scmp.eq.s32.totalorder %s24, 0
    %p158 = por %p156, %p157
    %s160 = sadd.s32 %s159, 1
    %p163 = scmp.eq.s32.totalorder %s18, 5
    %p164 = scmp.ne.s32.totalorder %s159, %s161
    %p165 = scmp.eq.s32.totalorder %s18, 0
    %p166 = por %p164, %p165
    %p167 = scmp.ne.s32.totalorder %s159, %s161
    %p168 = scmp.eq.s32.totalorder %s23, 5
    %p169 = por %p167, %p168
    %p170 = scmp.ne.s32.totalorder %s161, %s162
    %p171 = scmp.eq.s32.totalorder %s23, 0
    %p172 = por %p170, %p171
    %p173 = scmp.ne.s32.totalorder %s161, %s162
    %p174 = scmp.eq.s32.totalorder %s24, 5
    %p175 = por %p173, %p174
    %p177 = scmp.ne.s32.totalorder %s162, %s176
    %p178 = scmp.eq.s32.totalorder %s24, 0
    %p179 = por %p177, %p178
    %s181 = sadd.s32 %s180, 1
    %p184 = scmp.eq.s32.totalorder %s18, 5
    %p185 = scmp.ne.s32.totalorder %s180, %s182
    %p186 = scmp.eq.s32.totalorder %s18, 0
    %p187 = por %p185, %p186
    %p188 = scmp.ne.s32.totalorder %s180, %s182
    %p189 = scmp.eq.s32.totalorder %s23, 5
    %p190 = por %p188, %p189
    %p191 = scmp.ne.s32.totalorder %s182, %s183
    %p192 = scmp.eq.s32.totalorder %s23, 0
    %p193 = por %p191, %p192
    %p194 = scmp.ne.s32.totalorder %s182, %s183
    %p195 = scmp.eq.s32.totalorder %s24, 5
    %p196 = por %p194, %p195
    %p198 = scmp.ne.s32.totalorder %s183, %s197
    %p199 = scmp.eq.s32.totalorder %s24, 0
    %p200 = por %p198, %p199
    %s202 = sadd.s32 %s201, 1
    %p205 = scmp.eq.s32.totalorder %s18, 5
    %p206 = scmp.ne.s32.totalorder %s201, %s203
    %p207 = scmp.eq.s32.totalorder %s18, 0
    %p208 = por %p206, %p207
    %p209 = scmp.ne.s32.totalorder %s201, %s203
    %p210 = scmp.eq.s32.totalorder %s23, 5
    %p211 = por %p209, %p210
    %p212 = scmp.ne.s32.totalorder %s203, %s204
    %p213 = scmp.eq.s32.totalorder %s23, 0
    %p214 = por %p212, %p213
    %p215 = scmp.ne.s32.totalorder %s203, %s204
    %p216 = scmp.eq.s32.totalorder %s24, 5
    %p217 = por %p215, %p216
    %p219 = scmp.ne.s32.totalorder %s204, %s218
    %p220 = scmp.eq.s32.totalorder %s24, 0
    %p221 = por %p219, %p220
    %s223 = sadd.s32 %s222, 1
    %p226 = scmp.eq.s32.totalorder %s18, 5
    %p227 = scmp.ne.s32.totalorder %s222, %s224
    %p228 = scmp.eq.s32.totalorder %s18, 0
    %p229 = por %p227, %p228
    %p230 = scmp.ne.s32.totalorder %s222, %s224
    %p231 = scmp.eq.s32.totalorder %s23, 5
    %p232 = por %p230, %p231
    %p233 = scmp.ne.s32.totalorder %s224, %s225
    %p234 = scmp.eq.s32.totalorder %s23, 0
    %p235 = por %p233, %p234
    %p236 = scmp.ne.s32.totalorder %s224, %s225
    %p237 = scmp.eq.s32.totalorder %s24, 5
    %p238 = por %p236, %p237
    %p240 = scmp.ne.s32.totalorder %s225, %s239
    %p241 = scmp.eq.s32.totalorder %s24, 0
    %p242 = por %p240, %p241
    %s244 = sadd.s32 %s243, 1
    %p247 = scmp.eq.s32.totalorder %s18, 5
    %p248 = scmp.ne.s32.totalorder %s243, %s245
    %p249 = scmp.eq.s32.totalorder %s18, 0
    %p250 = por %p248, %p249
    %p251 = scmp.ne.s32.totalorder %s243, %s245
    %p252 = scmp.eq.s32.totalorder %s23, 5
    %p253 = por %p251, %p252
    %p254 = scmp.ne.s32.totalorder %s245, %s246
    %p255 = scmp.eq.s32.totalorder %s23, 0
    %p256 = por %p254, %p255
    %p257 = scmp.ne.s32.totalorder %s245, %s246
    %p258 = scmp.eq.s32.totalorder %s24, 5
    %p259 = por %p257, %p258
    %p261 = scmp.ne.s32.totalorder %s246, %s260
    %p262 = scmp.eq.s32.totalorder %s24, 0
    %p263 = por %p261, %p262
    %s265 = sadd.s32 %s264, 1
    %p268 = scmp.eq.s32.totalorder %s18, 5
    %p269 = scmp.ne.s32.totalorder %s264, %s266
    %p270 = scmp.eq.s32.totalorder %s18, 0
    %p271 = por %p269, %p270
    %p272 = scmp.ne.s32.totalorder %s264, %s266
    %p273 = scmp.eq.s32.totalorder %s23, 5
    %p274 = por %p272, %p273
    %p275 = scmp.ne.s32.totalorder %s266, %s267
    %p276 = scmp.eq.s32.totalorder %s23, 0
    %p277 = por %p275, %p276
    %p278 = scmp.ne.s32.totalorder %s266, %s267
    %p279 = scmp.eq.s32.totalorder %s24, 5
    %p280 = por %p278, %p279
    %p282 = scmp.ne.s32.totalorder %s267, %s281
    %p283 = scmp.eq.s32.totalorder %s24, 0
    %p284 = por %p282, %p283
    %s286 = sadd.s32 %s285, 1
    %p289 = scmp.eq.s32.totalorder %s18, 5
    %p290 = scmp.ne.s32.totalorder %s285, %s287
    %p291 = scmp.eq.s32.totalorder %s18, 0
    %p292 = por %p290, %p291
    %p293 = scmp.ne.s32.totalorder %s285, %s287
    %p294 = scmp.eq.s32.totalorder %s23, 5
    %p295 = por %p293, %p294
    %p296 = scmp.ne.s32.totalorder %s287, %s288
    %p297 = scmp.eq.s32.totalorder %s23, 0
    %p298 = por %p296, %p297
    %p299 = scmp.ne.s32.totalorder %s287, %s288
    %p300 = scmp.eq.s32.totalorder %s24, 5
    %p301 = por %p299, %p300
    %p303 = scmp.ne.s32.totalorder %s288, %s302
    %p304 = scmp.eq.s32.totalorder %s24, 0
    %p305 = por %p303, %p304
    %s307 = sadd.s32 %s306, 1
    %p310 = scmp.eq.s32.totalorder %s18, 5
    %p311 = scmp.ne.s32.totalorder %s306, %s308
    %p312 = scmp.eq.s32.totalorder %s18, 0
    %p313 = por %p311, %p312
    %p314 = scmp.ne.s32.totalorder %s306, %s308
    %p315 = scmp.eq.s32.totalorder %s23, 5
    %p316 = por %p314, %p315
    %p317 = scmp.ne.s32.totalorder %s308, %s309
    %p318 = scmp.eq.s32.totalorder %s23, 0
    %p319 = por %p317, %p318
    %p320 = scmp.ne.s32.totalorder %s308, %s309
    %p321 = scmp.eq.s32.totalorder %s24, 5
    %p322 = por %p320, %p321
    %p324 = scmp.ne.s32.totalorder %s309, %s323
    %p325 = scmp.eq.s32.totalorder %s24, 0
    %p326 = por %p324, %p325
    %s327 = ssub.s32 %s25, %s37
    %s328 = ssub.s32 %s26, %s33
    %s329 = sor.u32 %s327, %s328
    %p330 = scmp.eq.s32.totalorder %s329, 0
    %s332 = sadd.s32 %s331, 1
    %s333 = scalar_select %p330, %s331, %s332
    %p336 = pneg %p330
    %p337 = scmp.eq.s32.totalorder %s18, 5
    %p338 = por %p336, %p337
    %p339 = scmp.ne.s32.totalorder %s331, %s334
    %p340 = scmp.eq.s32.totalorder %s18, 0
    %p341 = por %p339, %p340
    %p342 = scmp.ne.s32.totalorder %s331, %s334
    %p343 = scmp.eq.s32.totalorder %s23, 5
    %p344 = por %p342, %p343
    %p345 = scmp.ne.s32.totalorder %s334, %s335
    %p346 = scmp.eq.s32.totalorder %s23, 0
    %p347 = por %p345, %p346
    %p348 = scmp.ne.s32.totalorder %s334, %s335
    %p349 = scmp.eq.s32.totalorder %s24, 5
    %p350 = por %p348, %p349
    %p352 = scmp.ne.s32.totalorder %s335, %s351
    %p353 = scmp.eq.s32.totalorder %s24, 0
    %p354 = por %p352, %p353
    %p355 = scmp.le.s32.totalorder 1, %s18
    %p356 = scmp.lt.s32.totalorder %s18, 7
    %p357 = pnand %p355, %p356
    %p358 = pneg %p357
    // Predicated region
    $region9: #{berp_conv_block.1} parent=5 // pred_check
      _
    $region10: #{berp_conv_block.1} parent=5 // pred_check_branch
      %360 = sbr.rel (%p357) target = $region12
    $region11: #{berp_conv_block.1} parent=5 // pred_region
      %s361 = ssub.s32 %s18, 1
      // Predicated region
      $region13: #{berp_conv_block.1} parent=11 // pred_check
        %p362 = pneg %p151
      $region14: #{berp_conv_block.1} parent=11 // pred_check_branch
        %364 = sbr.rel (%p362) target = $region16
      $region15: #{berp_conv_block.1} parent=11 // pred_region
        _
      $region16: #{berp_conv_block.1} parent=11 // pred_fallthru
        _
      // Predicated region
      $region17: #{berp_conv_block.1} parent=11 // pred_check
        %p365 = pneg %p172
      $region18: #{berp_conv_block.1} parent=11 // pred_check_branch
        %367 = sbr.rel (%p365) target = $region20
      $region19: #{berp_conv_block.1} parent=11 // pred_region
        _
      $region20: #{berp_conv_block.1} parent=11 // pred_fallthru
        _
      // Predicated region
      $region21: #{berp_conv_block.1} parent=11 // pred_check
        %p368 = pneg %p193
      $region22: #{berp_conv_block.1} parent=11 // pred_check_branch
        %370 = sbr.rel (%p368) target = $region24
      $region23: #{berp_conv_block.1} parent=11 // pred_region
        _
      $region24: #{berp_conv_block.1} parent=11 // pred_fallthru
        _
      // Predicated region
      $region25: #{berp_conv_block.1} parent=11 // pred_check
        %p371 = pneg %p214
      $region26: #{berp_conv_block.1} parent=11 // pred_check_branch
        %373 = sbr.rel (%p371) target = $region28
      $region27: #{berp_conv_block.1} parent=11 // pred_region
        _
      $region28: #{berp_conv_block.1} parent=11 // pred_fallthru
        _
      // Predicated region
      $region29: #{berp_conv_block.1} parent=11 // pred_check
        %p374 = pneg %p235
      $region30: #{berp_conv_block.1} parent=11 // pred_check_branch
        %376 = sbr.rel (%p374) target = $region32
      $region31: #{berp_conv_block.1} parent=11 // pred_region
        _
      $region32: #{berp_conv_block.1} parent=11 // pred_fallthru
        _
      // Predicated region
      $region33: #{berp_conv_block.1} parent=11 // pred_check
        %p377 = pneg %p256
      $region34: #{berp_conv_block.1} parent=11 // pred_check_branch
        %379 = sbr.rel (%p377) target = $region36
      $region35: #{berp_conv_block.1} parent=11 // pred_region
        _
      $region36: #{berp_conv_block.1} parent=11 // pred_fallthru
        _
      // Predicated region
      $region37: #{berp_conv_block.1} parent=11 // pred_check
        %p380 = pneg %p277
      $region38: #{berp_conv_block.1} parent=11 // pred_check_branch
        %382 = sbr.rel (%p380) target = $region40
      $region39: #{berp_conv_block.1} parent=11 // pred_region
        _
      $region40: #{berp_conv_block.1} parent=11 // pred_fallthru
        _
      // Predicated region
      $region41: #{berp_conv_block.1} parent=11 // pred_check
        %p383 = pneg %p298
      $region42: #{berp_conv_block.1} parent=11 // pred_check_branch
        %385 = sbr.rel (%p383) target = $region44
      $region43: #{berp_conv_block.1} parent=11 // pred_region
        _
      $region44: #{berp_conv_block.1} parent=11 // pred_fallthru
        _
      // Predicated region
      $region45: #{berp_conv_block.1} parent=11 // pred_check
        %p386 = pneg %p319
      $region46: #{berp_conv_block.1} parent=11 // pred_check_branch
        %388 = sbr.rel (%p386) target = $region48
      $region47: #{berp_conv_block.1} parent=11 // pred_region
        _
      $region48: #{berp_conv_block.1} parent=11 // pred_fallthru
        _
    $region12: #{berp_conv_block.1} parent=5 // pred_fallthru
      _
    %p389 = scmp.lt.s32.totalorder %s18, 6
    // Predicated region
    $region49: #{berp_conv_block.1} parent=5 // pred_check
      %p390 = pneg %p389
    $region50: #{berp_conv_block.1} parent=5 // pred_check_branch
      %392 = sbr.rel (%p390) target = $region52
    $region51: #{berp_conv_block.1} parent=5 // pred_region
      // Predicated region
      $region53: #{berp_conv_block.1} parent=51 // pred_check
        %p393 = pneg %p52
      $region54: #{berp_conv_block.1} parent=51 // pred_check_branch
        %395 = sbr.rel (%p393) target = $region56
      $region55: #{berp_conv_block.1} parent=51 // pred_region
        %s396 = smul.u32 4, %s26
        %p397 = scmp.lt.s32.totalorder %s25, 1
        %s398 = scalar_select %p397, %s25, 1
        %p399 = scmp.lt.s32.totalorder %s396, 11
        %s400 = scalar_select %p399, %s396, 11
        %s401 = smul.addr %s398, 12
        %s402 = sadd.s32 %s400, %s401
        %s403 = smul.addr %s402, 8
        %s404 = scalar_lea.vmem %s0, %s403
        %s405 = smul.u32 4, %s26
      $region56: #{berp_conv_block.1} parent=51 // pred_fallthru
        _
      // Predicated region
      $region57: #{berp_conv_block.1} parent=51 // pred_check
        %p406 = pneg %p88
      $region58: #{berp_conv_block.1} parent=51 // pred_check_branch
        %408 = sbr.rel (%p406) target = $region60
      $region59: #{berp_conv_block.1} parent=51 // pred_region
        %s409 = smul.u32 %s26, 2
        %s410 = ssub.s32 %s409, 1
        %p411 = scmp.gt.s32.totalorder %s410, 0
        %s412 = scalar_select %p411, %s410, 0
        %s413 = smul.u32 2, %s412
        %p414 = scmp.lt.s32.totalorder %s25, 1
        %s415 = scalar_select %p414, %s25, 1
        %p416 = scmp.lt.s32.totalorder %s413, 11
        %s417 = scalar_select %p416, %s413, 11
        %s418 = smul.addr %s415, 12
        %s419 = sadd.s32 %s417, %s418
        %s420 = smul.addr %s419, 8
        %s421 = scalar_lea.vmem %s1, %s420
        %s422 = smul.u32 %s26, 2
        %s423 = ssub.s32 %s422, 1
        %p424 = scmp.gt.s32.totalorder %s423, 0
        %s425 = scalar_select %p424, %s423, 0
        %s426 = smul.u32 2, %s425
      $region60: #{berp_conv_block.1} parent=51 // pred_fallthru
        _
      // Predicated region
      $region61: #{berp_conv_block.1} parent=51 // pred_check
        %p427 = pneg %p124
      $region62: #{berp_conv_block.1} parent=51 // pred_check_branch
        %429 = sbr.rel (%p427) target = $region64
      $region63: #{berp_conv_block.1} parent=51 // pred_region
        %s430 = smul.u32 %s26, 2
        %s431 = sadd.s32 %s430, 2
        %p432 = scmp.lt.s32.totalorder %s431, 5
        %s433 = scalar_select %p432, %s431, 5
        %s434 = smul.u32 2, %s433
        %p435 = scmp.lt.s32.totalorder %s25, 1
        %s436 = scalar_select %p435, %s25, 1
        %p437 = scmp.lt.s32.totalorder %s434, 11
        %s438 = scalar_select %p437, %s434, 11
        %s439 = smul.addr %s436, 12
        %s440 = sadd.s32 %s438, %s439
        %s441 = smul.addr %s440, 8
        %s442 = scalar_lea.vmem %s2, %s441
        %s443 = smul.u32 %s26, 2
        %s444 = sadd.s32 %s443, 2
        %p445 = scmp.lt.s32.totalorder %s444, 5
        %s446 = scalar_select %p445, %s444, 5
        %s447 = smul.u32 2, %s446
      $region64: #{berp_conv_block.1} parent=51 // pred_fallthru
        _
    $region52: #{berp_conv_block.1} parent=5 // pred_fallthru
      _
    %p448 = scmp.le.s32.totalorder 1, %s18
    %p449 = scmp.lt.s32.totalorder %s18, 7
    %p450 = pnand %p448, %p449
    %p451 = pneg %p450
    // Predicated region
    $region65: #{berp_conv_block.1} parent=5 // pred_check
      _
    $region66: #{berp_conv_block.1} parent=5 // pred_check_branch
      %453 = sbr.rel (%p450) target = $region68
    $region67: #{berp_conv_block.1} parent=5 // pred_region
      %s454 = ssub.s32 %s18, 1
      %s455 = smul.u32 4, %s28
      %p456 = scmp.lt.s32.totalorder %s27, 1
      %s457 = scalar_select %p456, %s27, 1
      %p458 = scmp.lt.s32.totalorder %s455, 11
      %s459 = scalar_select %p458, %s455, 11
      %s460 = smul.addr %s457, 12
      %s461 = sadd.s32 %s459, %s460
      %s462 = smul.addr %s461, 8
      %s463 = scalar_lea.vmem %s0, %s462
      %p464 = pneg %p58
      %p465 = pneg %p55
      %s466 = smul.u32 %s28, 2
      %s467 = ssub.s32 %s466, 1
      %p468 = scmp.gt.s32.totalorder %s467, 0
      %s469 = scalar_select %p468, %s467, 0
      %s470 = smul.u32 2, %s469
      %p471 = scmp.lt.s32.totalorder %s27, 1
      %s472 = scalar_select %p471, %s27, 1
      %p473 = scmp.lt.s32.totalorder %s470, 11
      %s474 = scalar_select %p473, %s470, 11
      %s475 = smul.addr %s472, 12
      %s476 = sadd.s32 %s474, %s475
      %s477 = smul.addr %s476, 8
      %s478 = scalar_lea.vmem %s1, %s477
      %p479 = pneg %p94
      %p480 = pneg %p91
      %s481 = smul.u32 %s28, 2
      %s482 = sadd.s32 %s481, 2
      %p483 = scmp.lt.s32.totalorder %s482, 5
      %s484 = scalar_select %p483, %s482, 5
      %s485 = smul.u32 2, %s484
      %p486 = scmp.lt.s32.totalorder %s27, 1
      %s487 = scalar_select %p486, %s27, 1
      %p488 = scmp.lt.s32.totalorder %s485, 11
      %s489 = scalar_select %p488, %s485, 11
      %s490 = smul.addr %s487, 12
      %s491 = sadd.s32 %s489, %s490
      %s492 = smul.addr %s491, 8
      %s493 = scalar_lea.vmem %s2, %s492
      %p494 = pneg %p130
      %p495 = pneg %p127
      %p496 = pneg %p151
      %p497 = pneg %p148
      %p498 = pneg %p172
      %p499 = pneg %p169
      %p500 = pneg %p193
      %p501 = pneg %p190
      %p502 = pneg %p214
      %p503 = pneg %p211
      %p504 = pneg %p235
      %p505 = pneg %p232
      %p506 = pneg %p256
      %p507 = pneg %p253
      %p508 = pneg %p277
      %p509 = pneg %p274
      %p510 = pneg %p298
      %p511 = pneg %p295
      %p512 = pneg %p319
      %p513 = pneg %p316
      %p514 = pneg %p347
      %p515 = pneg %p344
      %s516 = smul.u32 4, %s28
      %p517 = scmp.lt.s32.totalorder %s27, 1
      %s518 = scalar_select %p517, %s27, 1
      %p519 = scmp.lt.s32.totalorder %s516, 11
      %s520 = scalar_select %p519, %s516, 11
      %s521 = smul.addr %s518, 12
      %s522 = sadd.s32 %s520, %s521
      %s523 = smul.addr %s522, 8
      %s524 = scalar_lea.vmem %s12, %s523
      %s525 = smul.u32 4, %s28
      %p526 = scmp.lt.s32.totalorder %s27, 1
      %s527 = scalar_select %p526, %s27, 1
      %p528 = scmp.lt.s32.totalorder %s525, 11
      %s529 = scalar_select %p528, %s525, 11
      %s530 = smul.addr %s527, 12
      %s531 = sadd.s32 %s529, %s530
      %s532 = smul.addr %s531, 8
      %s533 = scalar_lea.vmem %s0, %s532
      %s534 = smul.u32 4, %s28
      %s535 = smul.u32 %s28, 2
      %s536 = ssub.s32 %s535, 1
      %p537 = scmp.gt.s32.totalorder %s536, 0
      %s538 = scalar_select %p537, %s536, 0
      %s539 = smul.u32 2, %s538
      %p540 = scmp.lt.s32.totalorder %s27, 1
      %s541 = scalar_select %p540, %s27, 1
      %p542 = scmp.lt.s32.totalorder %s539, 11
      %s543 = scalar_select %p542, %s539, 11
      %s544 = smul.addr %s541, 12
      %s545 = sadd.s32 %s543, %s544
      %s546 = smul.addr %s545, 8
      %s547 = scalar_lea.vmem %s1, %s546
      %s548 = smul.u32 %s28, 2
      %s549 = ssub.s32 %s548, 1
      %p550 = scmp.gt.s32.totalorder %s549, 0
      %s551 = scalar_select %p550, %s549, 0
      %s552 = smul.u32 2, %s551
      %s553 = smul.u32 %s28, 2
      %s554 = sadd.s32 %s553, 2
      %p555 = scmp.lt.s32.totalorder %s554, 5
      %s556 = scalar_select %p555, %s554, 5
      %s557 = smul.u32 2, %s556
      %p558 = scmp.lt.s32.totalorder %s27, 1
      %s559 = scalar_select %p558, %s27, 1
      %p560 = scmp.lt.s32.totalorder %s557, 11
      %s561 = scalar_select %p560, %s557, 11
      %s562 = smul.addr %s559, 12
      %s563 = sadd.s32 %s561, %s562
      %s564 = smul.addr %s563, 8
      %s565 = scalar_lea.vmem %s2, %s564
      %s566 = smul.u32 %s28, 2
      %s567 = sadd.s32 %s566, 2
      %p568 = scmp.lt.s32.totalorder %s567, 5
      %s569 = scalar_select %p568, %s567, 5
      %s570 = smul.u32 2, %s569
      %s571 = smul.u32 4, %s28
      %p572 = scmp.lt.s32.totalorder %s27, 1
      %s573 = scalar_select %p572, %s27, 1
      %p574 = scmp.lt.s32.totalorder %s571, 11
      %s575 = scalar_select %p574, %s571, 11
      %s576 = smul.addr %s573, 12
      %s577 = sadd.s32 %s575, %s576
      %s578 = smul.addr %s577, 8
      %s579 = scalar_lea.vmem %s12, %s578
      %s580 = smul.u32 4, %s28
      %v581 = vld [vmem:[%s547] sm:$0xff]
      %v582 = vld [vmem:[%s547 + $0x8] sm:$0xff]
      %v583 = vld [vmem:[%s533] sm:$0xff]
      %v584 = vld [vmem:[%s533 + $0x8] sm:$0xff]
      %v585 = vld [vmem:[%s533 + $0x10] sm:$0xff]
      %v586 = vld [vmem:[%s533 + $0x18] sm:$0xff]
      %v587 = vld [vmem:[%s565] sm:$0xff]
      %v588 = vld [vmem:[%s565 + $0x8] sm:$0xff]
      %589 = vadd.xlane.f32.xlu0 %v581
      %v590 = vpop.xlane.xlu0 %589
      %591 = vadd.xlane.f32.xlu0 %v582
      %v592 = vpop.xlane.xlu0 %591
      %593 = vadd.xlane.f32.xlu0 %v583
      %v594 = vpop.xlane.xlu0 %593
      %595 = vadd.xlane.f32.xlu0 %v584
      %v596 = vpop.xlane.xlu0 %595
      %597 = vadd.xlane.f32.xlu0 %v585
      %v598 = vpop.xlane.xlu0 %597
      %599 = vadd.xlane.f32.xlu0 %v586
      %v600 = vpop.xlane.xlu0 %599
      %601 = vadd.xlane.f32.xlu0 %v587
      %v602 = vpop.xlane.xlu0 %601
      %603 = vadd.xlane.f32.xlu0 %v588
      %v604 = vpop.xlane.xlu0 %603
      %v605 = vrcp.pop 128.0
      %v606 = vmul.f32 128.0, %v605
      %v607 = vsub.f32 1.0, %v606
      %v608 = vmul.f32 %v605, %v607
      %v609 = vadd.f32 %v605, %v608
      %vm610 = vweird.f32 %v605
      %v611 = vsel %vm610, %v605, %v609
      %v612 = vmul.f32 %v590, %v611
      %v613 = vmul.f32 %v592, %v611
      %v614 = vmul.f32 %v594, %v611
      %v615 = vmul.f32 %v596, %v611
      %v616 = vmul.f32 %v598, %v611
      %v617 = vmul.f32 %v600, %v611
      %v618 = vmul.f32 %v602, %v611
      %v619 = vmul.f32 %v604, %v611
      %v620 = vsub.f32 %v581, %v612
      %v621 = vsub.f32 %v582, %v613
      %v622 = vsub.f32 %v583, %v614
      %v623 = vsub.f32 %v584, %v615
      %v624 = vsub.f32 %v585, %v616
      %v625 = vsub.f32 %v586, %v617
      %v626 = vsub.f32 %v587, %v618
      %v627 = vsub.f32 %v588, %v619
      %v628 = vmul.f32 %v620, %v620
      %v629 = vmul.f32 %v621, %v621
      %v630 = vmul.f32 %v622, %v622
      %v631 = vmul.f32 %v623, %v623
      %v632 = vmul.f32 %v624, %v624
      %v633 = vmul.f32 %v625, %v625
      %v634 = vmul.f32 %v626, %v626
      %v635 = vmul.f32 %v627, %v627
      %636 = vadd.xlane.f32.xlu0 %v628
      %v637 = vpop.xlane.xlu0 %636
      %638 = vadd.xlane.f32.xlu0 %v629
      %v639 = vpop.xlane.xlu0 %638
      %640 = vadd.xlane.f32.xlu0 %v630
      %v641 = vpop.xlane.xlu0 %640
      %642 = vadd.xlane.f32.xlu0 %v631
      %v643 = vpop.xlane.xlu0 %642
      %644 = vadd.xlane.f32.xlu0 %v632
      %v645 = vpop.xlane.xlu0 %644
      %646 = vadd.xlane.f32.xlu0 %v633
      %v647 = vpop.xlane.xlu0 %646
      %648 = vadd.xlane.f32.xlu0 %v634
      %v649 = vpop.xlane.xlu0 %648
      %650 = vadd.xlane.f32.xlu0 %v635
      %v651 = vpop.xlane.xlu0 %650
      %v652 = vmul.f32 %v637, %v611
      %v653 = vmul.f32 %v639, %v611
      %v654 = vmul.f32 %v641, %v611
      %v655 = vmul.f32 %v643, %v611
      %v656 = vmul.f32 %v645, %v611
      %v657 = vmul.f32 %v647, %v611
      %v658 = vmul.f32 %v649, %v611
      %v659 = vmul.f32 %v651, %v611
      %v660 = vadd.f32 %v652, 1e-05
      %v661 = vadd.f32 %v653, 1e-05
      %v662 = vadd.f32 %v654, 1e-05
      %v663 = vadd.f32 %v655, 1e-05
      %v664 = vadd.f32 %v656, 1e-05
      %v665 = vadd.f32 %v657, 1e-05
      %v666 = vadd.f32 %v658, 1e-05
      %v667 = vadd.f32 %v659, 1e-05
      %v668 = vrsqrt.pop %v660
      %v669 = vmul.f32 %v668, %v660
      %v670 = vmul.f32 %v669, %v668
      %v671 = vmul.f32 0.5, %v670
      %v672 = vsub.f32 1.5, %v671
      %v673 = vmul.f32 %v668, %v672
      %vm674 = vweird.f32 %v660
      %vm675 = vweird.f32 %v668
      %vm676 = vmor %vm674, %vm675
      %v677 = vsel %vm676, %v668, %v673
      %v678 = vrsqrt.pop %v661
      %v679 = vmul.f32 %v678, %v661
      %v680 = vmul.f32 %v679, %v678
      %v681 = vmul.f32 0.5, %v680
      %v682 = vsub.f32 1.5, %v681
      %v683 = vmul.f32 %v678, %v682
      %vm684 = vweird.f32 %v661
      %vm685 = vweird.f32 %v678
      %vm686 = vmor %vm684, %vm685
      %v687 = vsel %vm686, %v678, %v683
      %v688 = vrsqrt.pop %v662
      %v689 = vmul.f32 %v688, %v662
      %v690 = vmul.f32 %v689, %v688
      %v691 = vmul.f32 0.5, %v690
      %v692 = vsub.f32 1.5, %v691
      %v693 = vmul.f32 %v688, %v692
      %vm694 = vweird.f32 %v662
      %vm695 = vweird.f32 %v688
      %vm696 = vmor %vm694, %vm695
      %v697 = vsel %vm696, %v688, %v693
      %v698 = vrsqrt.pop %v663
      %v699 = vmul.f32 %v698, %v663
      %v700 = vmul.f32 %v699, %v698
      %v701 = vmul.f32 0.5, %v700
      %v702 = vsub.f32 1.5, %v701
      %v703 = vmul.f32 %v698, %v702
      %vm704 = vweird.f32 %v663
      %vm705 = vweird.f32 %v698
      %vm706 = vmor %vm704, %vm705
      %v707 = vsel %vm706, %v698, %v703
      %v708 = vrsqrt.pop %v664
      %v709 = vmul.f32 %v708, %v664
      %v710 = vmul.f32 %v709, %v708
      %v711 = vmul.f32 0.5, %v710
      %v712 = vsub.f32 1.5, %v711
      %v713 = vmul.f32 %v708, %v712
      %vm714 = vweird.f32 %v664
      %vm715 = vweird.f32 %v708
      %vm716 = vmor %vm714, %vm715
      %v717 = vsel %vm716, %v708, %v713
      %v718 = vrsqrt.pop %v665
      %v719 = vmul.f32 %v718, %v665
      %v720 = vmul.f32 %v719, %v718
      %v721 = vmul.f32 0.5, %v720
      %v722 = vsub.f32 1.5, %v721
      %v723 = vmul.f32 %v718, %v722
      %vm724 = vweird.f32 %v665
      %vm725 = vweird.f32 %v718
      %vm726 = vmor %vm724, %vm725
      %v727 = vsel %vm726, %v718, %v723
      %v728 = vrsqrt.pop %v666
      %v729 = vmul.f32 %v728, %v666
      %v730 = vmul.f32 %v729, %v728
      %v731 = vmul.f32 0.5, %v730
      %v732 = vsub.f32 1.5, %v731
      %v733 = vmul.f32 %v728, %v732
      %vm734 = vweird.f32 %v666
      %vm735 = vweird.f32 %v728
      %vm736 = vmor %vm734, %vm735
      %v737 = vsel %vm736, %v728, %v733
      %v738 = vrsqrt.pop %v667
      %v739 = vmul.f32 %v738, %v667
      %v740 = vmul.f32 %v739, %v738
      %v741 = vmul.f32 0.5, %v740
      %v742 = vsub.f32 1.5, %v741
      %v743 = vmul.f32 %v738, %v742
      %vm744 = vweird.f32 %v667
      %vm745 = vweird.f32 %v738
      %vm746 = vmor %vm744, %vm745
      %v747 = vsel %vm746, %v738, %v743
      %v748 = vmul.f32 %v620, %v677
      %v749 = vmul.f32 %v621, %v687
      %v750 = vmul.f32 %v622, %v697
      %v751 = vmul.f32 %v623, %v707
      %v752 = vmul.f32 %v624, %v717
      %v753 = vmul.f32 %v625, %v727
      %v754 = vmul.f32 %v626, %v737
      %v755 = vmul.f32 %v627, %v747
      %v756 = vld [vmem:[%s3] sm:$0x1]
      %v758 = vperm.slane %v756, 0
      %v760 = vmul.f32 %v748, %v758
      %v761 = vmul.f32 %v749, %v758
      %v762 = vmul.f32 %v750, %v758
      %v763 = vmul.f32 %v751, %v758
      %v764 = vmul.f32 %v752, %v758
      %v765 = vmul.f32 %v753, %v758
      %v766 = vmul.f32 %v754, %v758
      %v767 = vmul.f32 %v755, %v758
      %v768 = vld [vmem:[%s4] sm:$0x1]
      %v770 = vperm.slane %v768, 0
      %v772 = vadd.f32 %v760, %v770
      %v773 = vadd.f32 %v761, %v770
      %v774 = vadd.f32 %v762, %v770
      %v775 = vadd.f32 %v763, %v770
      %v776 = vadd.f32 %v764, %v770
      %v777 = vadd.f32 %v765, %v770
      %v778 = vadd.f32 %v766, %v770
      %v779 = vadd.f32 %v767, %v770
      %v780 = vpack.c.bf16 %v773, %v772
      %v781 = vpack.c.bf16 %v775, %v774
      %v782 = vpack.c.bf16 %v777, %v776
      %v783 = vpack.c.bf16 %v779, %v778
      %v784 = vld [vmem:[%s5] sm:$0xff]
      %v785 = vld [vmem:[%s5 + $0x8] sm:$0xff]
      %v786 = vld [vmem:[%s5 + $0x10] sm:$0xff]
      %v787 = vld [vmem:[%s5 + $0x18] sm:$0xff]
      %v788 = vld [vmem:[%s5 + $0x20] sm:$0xff]
      %v789 = vld [vmem:[%s5 + $0x28] sm:$0xff]
      %v790 = vld [vmem:[%s5 + $0x30] sm:$0xff]
      %v791 = vld [vmem:[%s5 + $0x38] sm:$0xff]
      %v792 = vld [vmem:[%s5 + $0x40] sm:$0xff]
      %v793 = vld [vmem:[%s5 + $0x48] sm:$0xff]
      %v794 = vld [vmem:[%s5 + $0x50] sm:$0xff]
      %v795 = vld [vmem:[%s5 + $0x58] sm:$0xff]
      %v796 = vld [vmem:[%s5 + $0x60] sm:$0xff]
      %v797 = vld [vmem:[%s5 + $0x68] sm:$0xff]
      %v798 = vld [vmem:[%s5 + $0x70] sm:$0xff]
      %v799 = vld [vmem:[%s5 + $0x78] sm:$0xff]
      %v800 = vld [vmem:[%s6] sm:$0x3]
      %v802 = vperm.slane %v800, 0
      %v803 = vperm.slane %v800, 1
      %v822 = vunpack.c.l.b16 %v784
      %v823 = vunpack.c.h.b16 %v784
      %v824 = vunpack.c.l.b16 %v785
      %v825 = vunpack.c.h.b16 %v785
      %v826 = vunpack.c.l.b16 %v786
      %v827 = vunpack.c.h.b16 %v786
      %v828 = vunpack.c.l.b16 %v787
      %v829 = vunpack.c.h.b16 %v787
      %v830 = vunpack.c.l.b16 %v788
      %v831 = vunpack.c.h.b16 %v788
      %v832 = vunpack.c.l.b16 %v789
      %v833 = vunpack.c.h.b16 %v789
      %v834 = vunpack.c.l.b16 %v790
      %v835 = vunpack.c.h.b16 %v790
      %v836 = vunpack.c.l.b16 %v791
      %v837 = vunpack.c.h.b16 %v791
      %v838 = vunpack.c.l.b16 %v792
      %v839 = vunpack.c.h.b16 %v792
      %v840 = vunpack.c.l.b16 %v793
      %v841 = vunpack.c.h.b16 %v793
      %v842 = vunpack.c.l.b16 %v794
      %v843 = vunpack.c.h.b16 %v794
      %v844 = vunpack.c.l.b16 %v795
      %v845 = vunpack.c.h.b16 %v795
      %v846 = vunpack.c.l.b16 %v796
      %v847 = vunpack.c.h.b16 %v796
      %v848 = vunpack.c.l.b16 %v797
      %v849 = vunpack.c.h.b16 %v797
      %v850 = vunpack.c.l.b16 %v798
      %v851 = vunpack.c.h.b16 %v798
      %v852 = vunpack.c.l.b16 %v799
      %v853 = vunpack.c.h.b16 %v799
      %v854 = vpack.c.b16 %v824, %v822
      %v855 = vpack.c.b16 %v825, %v823
      %v856 = vpack.c.b16 %v828, %v826
      %v857 = vpack.c.b16 %v829, %v827
      %v858 = vpack.c.b16 %v832, %v830
      %v859 = vpack.c.b16 %v833, %v831
      %v860 = vpack.c.b16 %v836, %v834
      %v861 = vpack.c.b16 %v837, %v835
      %v862 = vpack.c.b16 %v840, %v838
      %v863 = vpack.c.b16 %v841, %v839
      %v864 = vpack.c.b16 %v844, %v842
      %v865 = vpack.c.b16 %v845, %v843
      %v866 = vpack.c.b16 %v848, %v846
      %v867 = vpack.c.b16 %v849, %v847
      %v868 = vpack.c.b16 %v852, %v850
      %v869 = vpack.c.b16 %v853, %v851
      %886 = vmatpush.bf16.msra.mxu0 %v868
      %887 = vmatpush.bf16.msra.mxu0 %v866
      %888 = vmatpush.bf16.msra.mxu0 %v864
      %889 = vmatpush.bf16.msra.mxu0 %v862
      %890 = vmatpush.bf16.msra.mxu0 %v860
      %891 = vmatpush.bf16.msra.mxu0 %v858
      %892 = vmatpush.bf16.msra.mxu0 %v856
      %893 = vmatpush.bf16.msra.mxu0 %v854
      %894 = vmatmul.bf16.gmra.mxu0 %v780
      %v895 = vpop.f32.mrf.mxu0
      %v896 = vadd.f32 %v802, %v895
      %v897 = vpop.f32.mrf.mxu0
      %v898 = vadd.f32 %v802, %v897
      %899 = vmatmul.bf16.gmra.mxu0 %v781
      %v900 = vpop.f32.mrf.mxu0
      %v901 = vadd.f32 %v802, %v900
      %v902 = vpop.f32.mrf.mxu0
      %v903 = vadd.f32 %v802, %v902
      %904 = vmatmul.bf16.gmra.mxu0 %v782
      %v905 = vpop.f32.mrf.mxu0
      %v906 = vadd.f32 %v802, %v905
      %v907 = vpop.f32.mrf.mxu0
      %v908 = vadd.f32 %v802, %v907
      %909 = vmatmul.bf16.gmra.mxu0 %v783
      %v910 = vpop.f32.mrf.mxu0
      %v911 = vadd.f32 %v802, %v910
      %v912 = vpop.f32.mrf.mxu0
      %v913 = vadd.f32 %v802, %v912
      %914 = vdwg.mxu0
      %915 = vmatpush.bf16.msra.mxu0 %v869
      %916 = vmatpush.bf16.msra.mxu0 %v867
      %917 = vmatpush.bf16.msra.mxu0 %v865
      %918 = vmatpush.bf16.msra.mxu0 %v863
      %919 = vmatpush.bf16.msra.mxu0 %v861
      %920 = vmatpush.bf16.msra.mxu0 %v859
      %921 = vmatpush.bf16.msra.mxu0 %v857
      %922 = vmatpush.bf16.msra.mxu0 %v855
      %923 = vmatmul.bf16.gmra.mxu0 %v780
      %v924 = vpop.f32.mrf.mxu0
      %v925 = vadd.f32 %v803, %v924
      %v926 = vpop.f32.mrf.mxu0
      %v927 = vadd.f32 %v803, %v926
      %928 = vmatmul.bf16.gmra.mxu0 %v781
      %v929 = vpop.f32.mrf.mxu0
      %v930 = vadd.f32 %v803, %v929
      %v931 = vpop.f32.mrf.mxu0
      %v932 = vadd.f32 %v803, %v931
      %933 = vmatmul.bf16.gmra.mxu0 %v782
      %v934 = vpop.f32.mrf.mxu0
      %v935 = vadd.f32 %v803, %v934
      %v936 = vpop.f32.mrf.mxu0
      %v937 = vadd.f32 %v803, %v936
      %938 = vmatmul.bf16.gmra.mxu0 %v783
      %v939 = vpop.f32.mrf.mxu0
      %v940 = vadd.f32 %v803, %v939
      %v941 = vpop.f32.mrf.mxu0
      %v942 = vadd.f32 %v803, %v941
      %943 = vdwg.mxu0
      %v944 = vsub.f32 0.0, %v925
      %v945 = vsub.f32 0.0, %v927
      %v946 = vsub.f32 0.0, %v930
      %v947 = vsub.f32 0.0, %v932
      %v948 = vsub.f32 0.0, %v935
      %v949 = vsub.f32 0.0, %v937
      %v950 = vsub.f32 0.0, %v940
      %v951 = vsub.f32 0.0, %v942
      %v952 = vmul.f32 %v944, 1.442695
      %v953 = vpow.pop %v952
      %v954 = vmul.f32 %v945, 1.442695
      %v955 = vpow.pop %v954
      %v956 = vmul.f32 %v946, 1.442695
      %v957 = vpow.pop %v956
      %v958 = vmul.f32 %v947, 1.442695
      %v959 = vpow.pop %v958
      %v960 = vmul.f32 %v948, 1.442695
      %v961 = vpow.pop %v960
      %v962 = vmul.f32 %v949, 1.442695
      %v963 = vpow.pop %v962
      %v964 = vmul.f32 %v950, 1.442695
      %v965 = vpow.pop %v964
      %v966 = vmul.f32 %v951, 1.442695
      %v967 = vpow.pop %v966
      %v968 = vadd.f32 %v953, 1.0
      %v969 = vadd.f32 %v955, 1.0
      %v970 = vadd.f32 %v957, 1.0
      %v971 = vadd.f32 %v959, 1.0
      %v972 = vadd.f32 %v961, 1.0
      %v973 = vadd.f32 %v963, 1.0
      %v974 = vadd.f32 %v965, 1.0
      %v975 = vadd.f32 %v967, 1.0
      %v976 = vrcp.pop %v968
      %v977 = vrcp.pop %v969
      %v978 = vrcp.pop %v970
      %v979 = vrcp.pop %v971
      %v980 = vrcp.pop %v972
      %v981 = vrcp.pop %v973
      %v982 = vrcp.pop %v974
      %v983 = vrcp.pop %v975
      %v984 = vmul.f32 %v896, %v976
      %v985 = vmul.f32 %v898, %v977
      %v986 = vmul.f32 %v901, %v978
      %v987 = vmul.f32 %v903, %v979
      %v988 = vmul.f32 %v906, %v980
      %v989 = vmul.f32 %v908, %v981
      %v990 = vmul.f32 %v911, %v982
      %v991 = vmul.f32 %v913, %v983
      %v992 = vlaneseq
      %v993 = vshrl.u32 %v992, 7
      %v994 = vadd.s32 %v993, 8
      %v995 = vadd.s32 %v993, 16
      %v996 = vadd.s32 %v993, 24
      %v997 = vadd.s32 %v993, 32
      %v998 = vadd.s32 %v993, 40
      %v999 = vadd.s32 %v993, 48
      %v1000 = vadd.s32 %v993, 56
      %s1001 = smul.u32 %s28, 32
      %s1002 = ssub.s32 %s1001, 16
      %v1003 = vstv %s1002
      %v1004 = vadd.s32 %v1003, %v993
      %v1005 = vadd.s32 %v1003, %v994
      %v1006 = vadd.s32 %v1003, %v995
      %v1007 = vadd.s32 %v1003, %v996
      %v1008 = vadd.s32 %v1003, %v997
      %v1009 = vadd.s32 %v1003, %v998
      %v1010 = vadd.s32 %v1003, %v999
      %v1011 = vadd.s32 %v1003, %v1000
      %vm1012 = vcmp.ge.s32.totalorder %v1004, 0
      %vm1013 = vcmp.ge.s32.totalorder %v1005, 0
      %vm1014 = vcmp.ge.s32.totalorder %v1006, 0
      %vm1015 = vcmp.ge.s32.totalorder %v1007, 0
      %vm1016 = vcmp.ge.s32.totalorder %v1008, 0
      %vm1017 = vcmp.ge.s32.totalorder %v1009, 0
      %vm1018 = vcmp.ge.s32.totalorder %v1010, 0
      %vm1019 = vcmp.ge.s32.totalorder %v1011, 0
      %vm1020 = vcmp.lt.s32.totalorder %v1004, 80
      %vm1021 = vcmp.lt.s32.totalorder %v1005, 80
      %vm1022 = vcmp.lt.s32.totalorder %v1006, 80
      %vm1023 = vcmp.lt.s32.totalorder %v1007, 80
      %vm1024 = vcmp.lt.s32.totalorder %v1008, 80
      %vm1025 = vcmp.lt.s32.totalorder %v1009, 80
      %vm1026 = vcmp.lt.s32.totalorder %v1010, 80
      %vm1027 = vcmp.lt.s32.totalorder %v1011, 80
      %vm1028 = vmand %vm1012, %vm1020
      %vm1029 = vmand %vm1013, %vm1021
      %vm1030 = vmand %vm1014, %vm1022
      %vm1031 = vmand %vm1015, %vm1023
      %vm1032 = vmand %vm1016, %vm1024
      %vm1033 = vmand %vm1017, %vm1025
      %vm1034 = vmand %vm1018, %vm1026
      %vm1035 = vmand %vm1019, %vm1027
      %v1036 = vsel %vm1028, 1, 0
      %v1037 = vsel %vm1029, 1, 0
      %v1038 = vsel %vm1030, 1, 0
      %v1039 = vsel %vm1031, 1, 0
      %v1040 = vsel %vm1032, 1, 0
      %v1041 = vsel %vm1033, 1, 0
      %v1042 = vsel %vm1034, 1, 0
      %v1043 = vsel %vm1035, 1, 0
      %vm1044 = vcmp.eq.s32.totalorder %v1036, 1
      %vm1045 = vcmp.eq.s32.totalorder %v1037, 1
      %vm1046 = vcmp.eq.s32.totalorder %v1038, 1
      %vm1047 = vcmp.eq.s32.totalorder %v1039, 1
      %vm1048 = vcmp.eq.s32.totalorder %v1040, 1
      %vm1049 = vcmp.eq.s32.totalorder %v1041, 1
      %vm1050 = vcmp.eq.s32.totalorder %v1042, 1
      %vm1051 = vcmp.eq.s32.totalorder %v1043, 1
      %v1052 = vsel %vm1044, %v984, 0.0
      %v1053 = vsel %vm1045, %v985, 0.0
      %v1054 = vsel %vm1046, %v986, 0.0
      %v1055 = vsel %vm1047, %v987, 0.0
      %v1056 = vsel %vm1048, %v988, 0.0
      %v1057 = vsel %vm1049, %v989, 0.0
      %v1058 = vsel %vm1050, %v990, 0.0
      %v1059 = vsel %vm1051, %v991, 0.0
      %v1060 = vld [vmem:[%s7 + $0x7] sm:$0x1]
      %v1061 = vperm.slane %v1060, 0
      %v1062 = vmul.f32 %v1053, %v1061
      %v1063 = vmul.f32 %v1054, %v1061
      %v1064 = vmul.f32 %v1055, %v1061
      %v1065 = vmul.f32 %v1056, %v1061
      %v1066 = vld [vmem:[%s7 + $0xf] sm:$0x1]
      %v1067 = vperm.slane %v1066, 0
      %v1068 = vmul.f32 %v1054, %v1067
      %v1069 = vmul.f32 %v1055, %v1067
      %v1070 = vmul.f32 %v1056, %v1067
      %v1071 = vmul.f32 %v1057, %v1067
      %v1072 = vadd.f32 %v1062, %v1068
      %v1073 = vadd.f32 %v1063, %v1069
      %v1074 = vadd.f32 %v1064, %v1070
      %v1075 = vadd.f32 %v1065, %v1071
      %v1076 = vld [vmem:[%s7 + $0x17] sm:$0x1]
      %v1077 = vperm.slane %v1076, 0
      %v1078 = vmul.f32 %v1055, %v1077
      %v1079 = vmul.f32 %v1056, %v1077
      %v1080 = vmul.f32 %v1057, %v1077
      %v1081 = vmul.f32 %v1058, %v1077
      %v1082 = vadd.f32 %v1072, %v1078
      %v1083 = vadd.f32 %v1073, %v1079
      %v1084 = vadd.f32 %v1074, %v1080
      %v1085 = vadd.f32 %v1075, %v1081
      %v1086 = vld [vmem:[%s7] sm:$0x1]
      %v1087 = vperm.slane %v1086, 0
      %v1088 = vmul.f32 %v1052, %v1087
      %v1089 = vmul.f32 %v1053, %v1087
      %v1090 = vmul.f32 %v1054, %v1087
      %v1091 = vmul.f32 %v1055, %v1087
      %v1092 = vmul.f32 %v1056, %v1087
      %vm1098 = vcmask 1046528
      %v1099 = vrot.slane %v1088, 1
      %v1100 = vrot.slane %v1089, 1
      %v1101 = vsel %vm1098, %v1099, %v1100
      %v1102 = vrot.slane %v1090, 1
      %v1103 = vsel %vm1098, %v1100, %v1102
      %v1104 = vrot.slane %v1091, 1
      %v1105 = vsel %vm1098, %v1102, %v1104
      %v1106 = vrot.slane %v1092, 1
      %v1107 = vsel %vm1098, %v1104, %v1106
      %v1112 = vadd.f32 %v1082, %v1101
      %v1113 = vadd.f32 %v1083, %v1103
      %v1114 = vadd.f32 %v1084, %v1105
      %v1115 = vadd.f32 %v1085, %v1107
      %v1116 = vld [vmem:[%s7 + $0x8] sm:$0x1]
      %v1117 = vperm.slane %v1116, 0
      %v1118 = vmul.f32 %v1053, %v1117
      %v1119 = vmul.f32 %v1054, %v1117
      %v1120 = vmul.f32 %v1055, %v1117
      %v1121 = vmul.f32 %v1056, %v1117
      %v1122 = vmul.f32 %v1057, %v1117
      %v1128 = vrot.slane %v1118, 1
      %v1129 = vrot.slane %v1119, 1
      %v1130 = vsel %vm1098, %v1128, %v1129
      %v1131 = vrot.slane %v1120, 1
      %v1132 = vsel %vm1098, %v1129, %v1131
      %v1133 = vrot.slane %v1121, 1
      %v1134 = vsel %vm1098, %v1131, %v1133
      %v1135 = vrot.slane %v1122, 1
      %v1136 = vsel %vm1098, %v1133, %v1135
      %v1141 = vadd.f32 %v1112, %v1130
      %v1142 = vadd.f32 %v1113, %v1132
      %v1143 = vadd.f32 %v1114, %v1134
      %v1144 = vadd.f32 %v1115, %v1136
      %v1145 = vld [vmem:[%s7 + $0x10] sm:$0x1]
      %v1146 = vperm.slane %v1145, 0
      %v1147 = vmul.f32 %v1054, %v1146
      %v1148 = vmul.f32 %v1055, %v1146
      %v1149 = vmul.f32 %v1056, %v1146
      %v1150 = vmul.f32 %v1057, %v1146
      %v1151 = vmul.f32 %v1058, %v1146
      %v1157 = vrot.slane %v1147, 1
      %v1158 = vrot.slane %v1148, 1
      %v1159 = vsel %vm1098, %v1157, %v1158
      %v1160 = vrot.slane %v1149, 1
      %v1161 = vsel %vm1098, %v1158, %v1160
      %v1162 = vrot.slane %v1150, 1
      %v1163 = vsel %vm1098, %v1160, %v1162
      %v1164 = vrot.slane %v1151, 1
      %v1165 = vsel %vm1098, %v1162, %v1164
      %v1170 = vadd.f32 %v1141, %v1159
      %v1171 = vadd.f32 %v1142, %v1161
      %v1172 = vadd.f32 %v1143, %v1163
      %v1173 = vadd.f32 %v1144, %v1165
      %v1174 = vld [vmem:[%s7 + $0x18] sm:$0x1]
      %v1175 = vperm.slane %v1174, 0
      %v1176 = vmul.f32 %v1055, %v1175
      %v1177 = vmul.f32 %v1056, %v1175
      %v1178 = vmul.f32 %v1057, %v1175
      %v1179 = vmul.f32 %v1058, %v1175
      %v1180 = vmul.f32 %v1059, %v1175
      %v1186 = vrot.slane %v1176, 1
      %v1187 = vrot.slane %v1177, 1
      %v1188 = vsel %vm1098, %v1186, %v1187
      %v1189 = vrot.slane %v1178, 1
      %v1190 = vsel %vm1098, %v1187, %v1189
      %v1191 = vrot.slane %v1179, 1
      %v1192 = vsel %vm1098, %v1189, %v1191
      %v1193 = vrot.slane %v1180, 1
      %v1194 = vsel %vm1098, %v1191, %v1193
      %v1199 = vadd.f32 %v1170, %v1188
      %v1200 = vadd.f32 %v1171, %v1190
      %v1201 = vadd.f32 %v1172, %v1192
      %v1202 = vadd.f32 %v1173, %v1194
      %v1203 = vld [vmem:[%s7 + $0x1] sm:$0x1]
      %v1204 = vperm.slane %v1203, 0
      %v1205 = vmul.f32 %v1052, %v1204
      %v1206 = vmul.f32 %v1053, %v1204
      %v1207 = vmul.f32 %v1054, %v1204
      %v1208 = vmul.f32 %v1055, %v1204
      %v1209 = vmul.f32 %v1056, %v1204
      %vm1215 = vcmask 1045504
      %v1216 = vrot.slane %v1205, 2
      %v1217 = vrot.slane %v1206, 2
      %v1218 = vsel %vm1215, %v1216, %v1217
      %v1219 = vrot.slane %v1207, 2
      %v1220 = vsel %vm1215, %v1217, %v1219
      %v1221 = vrot.slane %v1208, 2
      %v1222 = vsel %vm1215, %v1219, %v1221
      %v1223 = vrot.slane %v1209, 2
      %v1224 = vsel %vm1215, %v1221, %v1223
      %v1229 = vadd.f32 %v1199, %v1218
      %v1230 = vadd.f32 %v1200, %v1220
      %v1231 = vadd.f32 %v1201, %v1222
      %v1232 = vadd.f32 %v1202, %v1224
      %v1233 = vld [vmem:[%s7 + $0x9] sm:$0x1]
      %v1234 = vperm.slane %v1233, 0
      %v1235 = vmul.f32 %v1053, %v1234
      %v1236 = vmul.f32 %v1054, %v1234
      %v1237 = vmul.f32 %v1055, %v1234
      %v1238 = vmul.f32 %v1056, %v1234
      %v1239 = vmul.f32 %v1057, %v1234
      %v1245 = vrot.slane %v1235, 2
      %v1246 = vrot.slane %v1236, 2
      %v1247 = vsel %vm1215, %v1245, %v1246
      %v1248 = vrot.slane %v1237, 2
      %v1249 = vsel %vm1215, %v1246, %v1248
      %v1250 = vrot.slane %v1238, 2
      %v1251 = vsel %vm1215, %v1248, %v1250
      %v1252 = vrot.slane %v1239, 2
      %v1253 = vsel %vm1215, %v1250, %v1252
      %v1258 = vadd.f32 %v1229, %v1247
      %v1259 = vadd.f32 %v1230, %v1249
      %v1260 = vadd.f32 %v1231, %v1251
      %v1261 = vadd.f32 %v1232, %v1253
      %v1262 = vld [vmem:[%s7 + $0x11] sm:$0x1]
      %v1263 = vperm.slane %v1262, 0
      %v1264 = vmul.f32 %v1054, %v1263
      %v1265 = vmul.f32 %v1055, %v1263
      %v1266 = vmul.f32 %v1056, %v1263
      %v1267 = vmul.f32 %v1057, %v1263
      %v1268 = vmul.f32 %v1058, %v1263
      %v1274 = vrot.slane %v1264, 2
      %v1275 = vrot.slane %v1265, 2
      %v1276 = vsel %vm1215, %v1274, %v1275
      %v1277 = vrot.slane %v1266, 2
      %v1278 = vsel %vm1215, %v1275, %v1277
      %v1279 = vrot.slane %v1267, 2
      %v1280 = vsel %vm1215, %v1277, %v1279
      %v1281 = vrot.slane %v1268, 2
      %v1282 = vsel %vm1215, %v1279, %v1281
      %v1287 = vadd.f32 %v1258, %v1276
      %v1288 = vadd.f32 %v1259, %v1278
      %v1289 = vadd.f32 %v1260, %v1280
      %v1290 = vadd.f32 %v1261, %v1282
      %v1291 = vld [vmem:[%s7 + $0x19] sm:$0x1]
      %v1292 = vperm.slane %v1291, 0
      %v1293 = vmul.f32 %v1055, %v1292
      %v1294 = vmul.f32 %v1056, %v1292
      %v1295 = vmul.f32 %v1057, %v1292
      %v1296 = vmul.f32 %v1058, %v1292
      %v1297 = vmul.f32 %v1059, %v1292
      %v1303 = vrot.slane %v1293, 2
      %v1304 = vrot.slane %v1294, 2
      %v1305 = vsel %vm1215, %v1303, %v1304
      %v1306 = vrot.slane %v1295, 2
      %v1307 = vsel %vm1215, %v1304, %v1306
      %v1308 = vrot.slane %v1296, 2
      %v1309 = vsel %vm1215, %v1306, %v1308
      %v1310 = vrot.slane %v1297, 2
      %v1311 = vsel %vm1215, %v1308, %v1310
      %v1316 = vadd.f32 %v1287, %v1305
      %v1317 = vadd.f32 %v1288, %v1307
      %v1318 = vadd.f32 %v1289, %v1309
      %v1319 = vadd.f32 %v1290, %v1311
      %v1320 = vld [vmem:[%s7 + $0x2] sm:$0x1]
      %v1321 = vperm.slane %v1320, 0
      %v1322 = vmul.f32 %v1052, %v1321
      %v1323 = vmul.f32 %v1053, %v1321
      %v1324 = vmul.f32 %v1054, %v1321
      %v1325 = vmul.f32 %v1055, %v1321
      %v1326 = vmul.f32 %v1056, %v1321
      %vm1332 = vcmask 1044480
      %v1333 = vrot.slane %v1322, 3
      %v1334 = vrot.slane %v1323, 3
      %v1335 = vsel %vm1332, %v1333, %v1334
      %v1336 = vrot.slane %v1324, 3
      %v1337 = vsel %vm1332, %v1334, %v1336
      %v1338 = vrot.slane %v1325, 3
      %v1339 = vsel %vm1332, %v1336, %v1338
      %v1340 = vrot.slane %v1326, 3
      %v1341 = vsel %vm1332, %v1338, %v1340
      %v1346 = vadd.f32 %v1316, %v1335
      %v1347 = vadd.f32 %v1317, %v1337
      %v1348 = vadd.f32 %v1318, %v1339
      %v1349 = vadd.f32 %v1319, %v1341
      %v1350 = vld [vmem:[%s7 + $0xa] sm:$0x1]
      %v1351 = vperm.slane %v1350, 0
      %v1352 = vmul.f32 %v1053, %v1351
      %v1353 = vmul.f32 %v1054, %v1351
      %v1354 = vmul.f32 %v1055, %v1351
      %v1355 = vmul.f32 %v1056, %v1351
      %v1356 = vmul.f32 %v1057, %v1351
      %v1362 = vrot.slane %v1352, 3
      %v1363 = vrot.slane %v1353, 3
      %v1364 = vsel %vm1332, %v1362, %v1363
      %v1365 = vrot.slane %v1354, 3
      %v1366 = vsel %vm1332, %v1363, %v1365
      %v1367 = vrot.slane %v1355, 3
      %v1368 = vsel %vm1332, %v1365, %v1367
      %v1369 = vrot.slane %v1356, 3
      %v1370 = vsel %vm1332, %v1367, %v1369
      %v1375 = vadd.f32 %v1346, %v1364
      %v1376 = vadd.f32 %v1347, %v1366
      %v1377 = vadd.f32 %v1348, %v1368
      %v1378 = vadd.f32 %v1349, %v1370
      %v1379 = vld [vmem:[%s7 + $0x12] sm:$0x1]
      %v1380 = vperm.slane %v1379, 0
      %v1381 = vmul.f32 %v1054, %v1380
      %v1382 = vmul.f32 %v1055, %v1380
      %v1383 = vmul.f32 %v1056, %v1380
      %v1384 = vmul.f32 %v1057, %v1380
      %v1385 = vmul.f32 %v1058, %v1380
      %v1391 = vrot.slane %v1381, 3
      %v1392 = vrot.slane %v1382, 3
      %v1393 = vsel %vm1332, %v1391, %v1392
      %v1394 = vrot.slane %v1383, 3
      %v1395 = vsel %vm1332, %v1392, %v1394
      %v1396 = vrot.slane %v1384, 3
      %v1397 = vsel %vm1332, %v1394, %v1396
      %v1398 = vrot.slane %v1385, 3
      %v1399 = vsel %vm1332, %v1396, %v1398
      %v1404 = vadd.f32 %v1375, %v1393
      %v1405 = vadd.f32 %v1376, %v1395
      %v1406 = vadd.f32 %v1377, %v1397
      %v1407 = vadd.f32 %v1378, %v1399
      %v1408 = vld [vmem:[%s7 + $0x1a] sm:$0x1]
      %v1409 = vperm.slane %v1408, 0
      %v1410 = vmul.f32 %v1055, %v1409
      %v1411 = vmul.f32 %v1056, %v1409
      %v1412 = vmul.f32 %v1057, %v1409
      %v1413 = vmul.f32 %v1058, %v1409
      %v1414 = vmul.f32 %v1059, %v1409
      %v1420 = vrot.slane %v1410, 3
      %v1421 = vrot.slane %v1411, 3
      %v1422 = vsel %vm1332, %v1420, %v1421
      %v1423 = vrot.slane %v1412, 3
      %v1424 = vsel %vm1332, %v1421, %v1423
      %v1425 = vrot.slane %v1413, 3
      %v1426 = vsel %vm1332, %v1423, %v1425
      %v1427 = vrot.slane %v1414, 3
      %v1428 = vsel %vm1332, %v1425, %v1427
      %v1433 = vadd.f32 %v1404, %v1422
      %v1434 = vadd.f32 %v1405, %v1424
      %v1435 = vadd.f32 %v1406, %v1426
      %v1436 = vadd.f32 %v1407, %v1428
      %v1437 = vld [vmem:[%s7 + $0x3] sm:$0x1]
      %v1438 = vperm.slane %v1437, 0
      %v1439 = vmul.f32 %v1052, %v1438
      %v1440 = vmul.f32 %v1053, %v1438
      %v1441 = vmul.f32 %v1054, %v1438
      %v1442 = vmul.f32 %v1055, %v1438
      %v1443 = vmul.f32 %v1056, %v1438
      %vm1449 = vcmask 1043456
      %v1450 = vrot.slane %v1439, 4
      %v1451 = vrot.slane %v1440, 4
      %v1452 = vsel %vm1449, %v1450, %v1451
      %v1453 = vrot.slane %v1441, 4
      %v1454 = vsel %vm1449, %v1451, %v1453
      %v1455 = vrot.slane %v1442, 4
      %v1456 = vsel %vm1449, %v1453, %v1455
      %v1457 = vrot.slane %v1443, 4
      %v1458 = vsel %vm1449, %v1455, %v1457
      %v1463 = vadd.f32 %v1433, %v1452
      %v1464 = vadd.f32 %v1434, %v1454
      %v1465 = vadd.f32 %v1435, %v1456
      %v1466 = vadd.f32 %v1436, %v1458
      %v1467 = vld [vmem:[%s7 + $0xb] sm:$0x1]
      %v1468 = vperm.slane %v1467, 0
      %v1469 = vmul.f32 %v1053, %v1468
      %v1470 = vmul.f32 %v1054, %v1468
      %v1471 = vmul.f32 %v1055, %v1468
      %v1472 = vmul.f32 %v1056, %v1468
      %v1473 = vmul.f32 %v1057, %v1468
      %v1479 = vrot.slane %v1469, 4
      %v1480 = vrot.slane %v1470, 4
      %v1481 = vsel %vm1449, %v1479, %v1480
      %v1482 = vrot.slane %v1471, 4
      %v1483 = vsel %vm1449, %v1480, %v1482
      %v1484 = vrot.slane %v1472, 4
      %v1485 = vsel %vm1449, %v1482, %v1484
      %v1486 = vrot.slane %v1473, 4
      %v1487 = vsel %vm1449, %v1484, %v1486
      %v1492 = vadd.f32 %v1463, %v1481
      %v1493 = vadd.f32 %v1464, %v1483
      %v1494 = vadd.f32 %v1465, %v1485
      %v1495 = vadd.f32 %v1466, %v1487
      %v1496 = vld [vmem:[%s7 + $0x13] sm:$0x1]
      %v1497 = vperm.slane %v1496, 0
      %v1498 = vmul.f32 %v1054, %v1497
      %v1499 = vmul.f32 %v1055, %v1497
      %v1500 = vmul.f32 %v1056, %v1497
      %v1501 = vmul.f32 %v1057, %v1497
      %v1502 = vmul.f32 %v1058, %v1497
      %v1508 = vrot.slane %v1498, 4
      %v1509 = vrot.slane %v1499, 4
      %v1510 = vsel %vm1449, %v1508, %v1509
      %v1511 = vrot.slane %v1500, 4
      %v1512 = vsel %vm1449, %v1509, %v1511
      %v1513 = vrot.slane %v1501, 4
      %v1514 = vsel %vm1449, %v1511, %v1513
      %v1515 = vrot.slane %v1502, 4
      %v1516 = vsel %vm1449, %v1513, %v1515
      %v1521 = vadd.f32 %v1492, %v1510
      %v1522 = vadd.f32 %v1493, %v1512
      %v1523 = vadd.f32 %v1494, %v1514
      %v1524 = vadd.f32 %v1495, %v1516
      %v1525 = vld [vmem:[%s7 + $0x1b] sm:$0x1]
      %v1526 = vperm.slane %v1525, 0
      %v1527 = vmul.f32 %v1055, %v1526
      %v1528 = vmul.f32 %v1056, %v1526
      %v1529 = vmul.f32 %v1057, %v1526
      %v1530 = vmul.f32 %v1058, %v1526
      %v1531 = vmul.f32 %v1059, %v1526
      %v1537 = vrot.slane %v1527, 4
      %v1538 = vrot.slane %v1528, 4
      %v1539 = vsel %vm1449, %v1537, %v1538
      %v1540 = vrot.slane %v1529, 4
      %v1541 = vsel %vm1449, %v1538, %v1540
      %v1542 = vrot.slane %v1530, 4
      %v1543 = vsel %vm1449, %v1540, %v1542
      %v1544 = vrot.slane %v1531, 4
      %v1545 = vsel %vm1449, %v1542, %v1544
      %v1550 = vadd.f32 %v1521, %v1539
      %v1551 = vadd.f32 %v1522, %v1541
      %v1552 = vadd.f32 %v1523, %v1543
      %v1553 = vadd.f32 %v1524, %v1545
      %v1554 = vld [vmem:[%s7 + $0x4] sm:$0x1]
      %v1555 = vperm.slane %v1554, 0
      %v1556 = vmul.f32 %v1052, %v1555
      %v1557 = vmul.f32 %v1053, %v1555
      %v1558 = vmul.f32 %v1054, %v1555
      %v1559 = vmul.f32 %v1055, %v1555
      %v1560 = vmul.f32 %v1056, %v1555
      %vm1566 = vcmask 1042432
      %v1567 = vrot.slane %v1556, 5
      %v1568 = vrot.slane %v1557, 5
      %v1569 = vsel %vm1566, %v1567, %v1568
      %v1570 = vrot.slane %v1558, 5
      %v1571 = vsel %vm1566, %v1568, %v1570
      %v1572 = vrot.slane %v1559, 5
      %v1573 = vsel %vm1566, %v1570, %v1572
      %v1574 = vrot.slane %v1560, 5
      %v1575 = vsel %vm1566, %v1572, %v1574
      %v1580 = vadd.f32 %v1550, %v1569
      %v1581 = vadd.f32 %v1551, %v1571
      %v1582 = vadd.f32 %v1552, %v1573
      %v1583 = vadd.f32 %v1553, %v1575
      %v1584 = vld [vmem:[%s7 + $0xc] sm:$0x1]
      %v1585 = vperm.slane %v1584, 0
      %v1586 = vmul.f32 %v1053, %v1585
      %v1587 = vmul.f32 %v1054, %v1585
      %v1588 = vmul.f32 %v1055, %v1585
      %v1589 = vmul.f32 %v1056, %v1585
      %v1590 = vmul.f32 %v1057, %v1585
      %v1596 = vrot.slane %v1586, 5
      %v1597 = vrot.slane %v1587, 5
      %v1598 = vsel %vm1566, %v1596, %v1597
      %v1599 = vrot.slane %v1588, 5
      %v1600 = vsel %vm1566, %v1597, %v1599
      %v1601 = vrot.slane %v1589, 5
      %v1602 = vsel %vm1566, %v1599, %v1601
      %v1603 = vrot.slane %v1590, 5
      %v1604 = vsel %vm1566, %v1601, %v1603
      %v1609 = vadd.f32 %v1580, %v1598
      %v1610 = vadd.f32 %v1581, %v1600
      %v1611 = vadd.f32 %v1582, %v1602
      %v1612 = vadd.f32 %v1583, %v1604
      %v1613 = vld [vmem:[%s7 + $0x14] sm:$0x1]
      %v1614 = vperm.slane %v1613, 0
      %v1615 = vmul.f32 %v1054, %v1614
      %v1616 = vmul.f32 %v1055, %v1614
      %v1617 = vmul.f32 %v1056, %v1614
      %v1618 = vmul.f32 %v1057, %v1614
      %v1619 = vmul.f32 %v1058, %v1614
      %v1625 = vrot.slane %v1615, 5
      %v1626 = vrot.slane %v1616, 5
      %v1627 = vsel %vm1566, %v1625, %v1626
      %v1628 = vrot.slane %v1617, 5
      %v1629 = vsel %vm1566, %v1626, %v1628
      %v1630 = vrot.slane %v1618, 5
      %v1631 = vsel %vm1566, %v1628, %v1630
      %v1632 = vrot.slane %v1619, 5
      %v1633 = vsel %vm1566, %v1630, %v1632
      %v1638 = vadd.f32 %v1609, %v1627
      %v1639 = vadd.f32 %v1610, %v1629
      %v1640 = vadd.f32 %v1611, %v1631
      %v1641 = vadd.f32 %v1612, %v1633
      %v1642 = vld [vmem:[%s7 + $0x1c] sm:$0x1]
      %v1643 = vperm.slane %v1642, 0
      %v1644 = vmul.f32 %v1055, %v1643
      %v1645 = vmul.f32 %v1056, %v1643
      %v1646 = vmul.f32 %v1057, %v1643
      %v1647 = vmul.f32 %v1058, %v1643
      %v1648 = vmul.f32 %v1059, %v1643
      %v1654 = vrot.slane %v1644, 5
      %v1655 = vrot.slane %v1645, 5
      %v1656 = vsel %vm1566, %v1654, %v1655
      %v1657 = vrot.slane %v1646, 5
      %v1658 = vsel %vm1566, %v1655, %v1657
      %v1659 = vrot.slane %v1647, 5
      %v1660 = vsel %vm1566, %v1657, %v1659
      %v1661 = vrot.slane %v1648, 5
      %v1662 = vsel %vm1566, %v1659, %v1661
      %v1667 = vadd.f32 %v1638, %v1656
      %v1668 = vadd.f32 %v1639, %v1658
      %v1669 = vadd.f32 %v1640, %v1660
      %v1670 = vadd.f32 %v1641, %v1662
      %v1671 = vld [vmem:[%s7 + $0x5] sm:$0x1]
      %v1672 = vperm.slane %v1671, 0
      %v1673 = vmul.f32 %v1052, %v1672
      %v1674 = vmul.f32 %v1053, %v1672
      %v1675 = vmul.f32 %v1054, %v1672
      %v1676 = vmul.f32 %v1055, %v1672
      %v1677 = vmul.f32 %v1056, %v1672
      %vm1683 = vcmask 1041408
      %v1684 = vrot.slane %v1673, 6
      %v1685 = vrot.slane %v1674, 6
      %v1686 = vsel %vm1683, %v1684, %v1685
      %v1687 = vrot.slane %v1675, 6
      %v1688 = vsel %vm1683, %v1685, %v1687
      %v1689 = vrot.slane %v1676, 6
      %v1690 = vsel %vm1683, %v1687, %v1689
      %v1691 = vrot.slane %v1677, 6
      %v1692 = vsel %vm1683, %v1689, %v1691
      %v1697 = vadd.f32 %v1667, %v1686
      %v1698 = vadd.f32 %v1668, %v1688
      %v1699 = vadd.f32 %v1669, %v1690
      %v1700 = vadd.f32 %v1670, %v1692
      %v1701 = vld [vmem:[%s7 + $0xd] sm:$0x1]
      %v1702 = vperm.slane %v1701, 0
      %v1703 = vmul.f32 %v1053, %v1702
      %v1704 = vmul.f32 %v1054, %v1702
      %v1705 = vmul.f32 %v1055, %v1702
      %v1706 = vmul.f32 %v1056, %v1702
      %v1707 = vmul.f32 %v1057, %v1702
      %v1713 = vrot.slane %v1703, 6
      %v1714 = vrot.slane %v1704, 6
      %v1715 = vsel %vm1683, %v1713, %v1714
      %v1716 = vrot.slane %v1705, 6
      %v1717 = vsel %vm1683, %v1714, %v1716
      %v1718 = vrot.slane %v1706, 6
      %v1719 = vsel %vm1683, %v1716, %v1718
      %v1720 = vrot.slane %v1707, 6
      %v1721 = vsel %vm1683, %v1718, %v1720
      %v1726 = vadd.f32 %v1697, %v1715
      %v1727 = vadd.f32 %v1698, %v1717
      %v1728 = vadd.f32 %v1699, %v1719
      %v1729 = vadd.f32 %v1700, %v1721
      %v1730 = vld [vmem:[%s7 + $0x15] sm:$0x1]
      %v1731 = vperm.slane %v1730, 0
      %v1732 = vmul.f32 %v1054, %v1731
      %v1733 = vmul.f32 %v1055, %v1731
      %v1734 = vmul.f32 %v1056, %v1731
      %v1735 = vmul.f32 %v1057, %v1731
      %v1736 = vmul.f32 %v1058, %v1731
      %v1742 = vrot.slane %v1732, 6
      %v1743 = vrot.slane %v1733, 6
      %v1744 = vsel %vm1683, %v1742, %v1743
      %v1745 = vrot.slane %v1734, 6
      %v1746 = vsel %vm1683, %v1743, %v1745
      %v1747 = vrot.slane %v1735, 6
      %v1748 = vsel %vm1683, %v1745, %v1747
      %v1749 = vrot.slane %v1736, 6
      %v1750 = vsel %vm1683, %v1747, %v1749
      %v1755 = vadd.f32 %v1726, %v1744
      %v1756 = vadd.f32 %v1727, %v1746
      %v1757 = vadd.f32 %v1728, %v1748
      %v1758 = vadd.f32 %v1729, %v1750
      %v1759 = vld [vmem:[%s7 + $0x1d] sm:$0x1]
      %v1760 = vperm.slane %v1759, 0
      %v1761 = vmul.f32 %v1055, %v1760
      %v1762 = vmul.f32 %v1056, %v1760
      %v1763 = vmul.f32 %v1057, %v1760
      %v1764 = vmul.f32 %v1058, %v1760
      %v1765 = vmul.f32 %v1059, %v1760
      %v1771 = vrot.slane %v1761, 6
      %v1772 = vrot.slane %v1762, 6
      %v1773 = vsel %vm1683, %v1771, %v1772
      %v1774 = vrot.slane %v1763, 6
      %v1775 = vsel %vm1683, %v1772, %v1774
      %v1776 = vrot.slane %v1764, 6
      %v1777 = vsel %vm1683, %v1774, %v1776
      %v1778 = vrot.slane %v1765, 6
      %v1779 = vsel %vm1683, %v1776, %v1778
      %v1784 = vadd.f32 %v1755, %v1773
      %v1785 = vadd.f32 %v1756, %v1775
      %v1786 = vadd.f32 %v1757, %v1777
      %v1787 = vadd.f32 %v1758, %v1779
      %v1788 = vld [vmem:[%s7 + $0x6] sm:$0x1]
      %v1789 = vperm.slane %v1788, 0
      %v1790 = vmul.f32 %v1052, %v1789
      %v1791 = vmul.f32 %v1053, %v1789
      %v1792 = vmul.f32 %v1054, %v1789
      %v1793 = vmul.f32 %v1055, %v1789
      %v1794 = vmul.f32 %v1056, %v1789
      %vm1800 = vcmask 1040384
      %v1801 = vrot.slane %v1790, 7
      %v1802 = vrot.slane %v1791, 7
      %v1803 = vsel %vm1800, %v1801, %v1802
      %v1804 = vrot.slane %v1792, 7
      %v1805 = vsel %vm1800, %v1802, %v1804
      %v1806 = vrot.slane %v1793, 7
      %v1807 = vsel %vm1800, %v1804, %v1806
      %v1808 = vrot.slane %v1794, 7
      %v1809 = vsel %vm1800, %v1806, %v1808
      %v1814 = vadd.f32 %v1784, %v1803
      %v1815 = vadd.f32 %v1785, %v1805
      %v1816 = vadd.f32 %v1786, %v1807
      %v1817 = vadd.f32 %v1787, %v1809
      %v1818 = vld [vmem:[%s7 + $0xe] sm:$0x1]
      %v1819 = vperm.slane %v1818, 0
      %v1820 = vmul.f32 %v1053, %v1819
      %v1821 = vmul.f32 %v1054, %v1819
      %v1822 = vmul.f32 %v1055, %v1819
      %v1823 = vmul.f32 %v1056, %v1819
      %v1824 = vmul.f32 %v1057, %v1819
      %v1830 = vrot.slane %v1820, 7
      %v1831 = vrot.slane %v1821, 7
      %v1832 = vsel %vm1800, %v1830, %v1831
      %v1833 = vrot.slane %v1822, 7
      %v1834 = vsel %vm1800, %v1831, %v1833
      %v1835 = vrot.slane %v1823, 7
      %v1836 = vsel %vm1800, %v1833, %v1835
      %v1837 = vrot.slane %v1824, 7
      %v1838 = vsel %vm1800, %v1835, %v1837
      %v1843 = vadd.f32 %v1814, %v1832
      %v1844 = vadd.f32 %v1815, %v1834
      %v1845 = vadd.f32 %v1816, %v1836
      %v1846 = vadd.f32 %v1817, %v1838
      %v1847 = vld [vmem:[%s7 + $0x16] sm:$0x1]
      %v1848 = vperm.slane %v1847, 0
      %v1849 = vmul.f32 %v1054, %v1848
      %v1850 = vmul.f32 %v1055, %v1848
      %v1851 = vmul.f32 %v1056, %v1848
      %v1852 = vmul.f32 %v1057, %v1848
      %v1853 = vmul.f32 %v1058, %v1848
      %v1859 = vrot.slane %v1849, 7
      %v1860 = vrot.slane %v1850, 7
      %v1861 = vsel %vm1800, %v1859, %v1860
      %v1862 = vrot.slane %v1851, 7
      %v1863 = vsel %vm1800, %v1860, %v1862
      %v1864 = vrot.slane %v1852, 7
      %v1865 = vsel %vm1800, %v1862, %v1864
      %v1866 = vrot.slane %v1853, 7
      %v1867 = vsel %vm1800, %v1864, %v1866
      %v1872 = vadd.f32 %v1843, %v1861
      %v1873 = vadd.f32 %v1844, %v1863
      %v1874 = vadd.f32 %v1845, %v1865
      %v1875 = vadd.f32 %v1846, %v1867
      %v1876 = vld [vmem:[%s7 + $0x1e] sm:$0x1]
      %v1877 = vperm.slane %v1876, 0
      %v1878 = vmul.f32 %v1055, %v1877
      %v1879 = vmul.f32 %v1056, %v1877
      %v1880 = vmul.f32 %v1057, %v1877
      %v1881 = vmul.f32 %v1058, %v1877
      %v1882 = vmul.f32 %v1059, %v1877
      %v1888 = vrot.slane %v1878, 7
      %v1889 = vrot.slane %v1879, 7
      %v1890 = vsel %vm1800, %v1888, %v1889
      %v1891 = vrot.slane %v1880, 7
      %v1892 = vsel %vm1800, %v1889, %v1891
      %v1893 = vrot.slane %v1881, 7
      %v1894 = vsel %vm1800, %v1891, %v1893
      %v1895 = vrot.slane %v1882, 7
      %v1896 = vsel %vm1800, %v1893, %v1895
      %v1901 = vadd.f32 %v1872, %v1890
      %v1902 = vadd.f32 %v1873, %v1892
      %v1903 = vadd.f32 %v1874, %v1894
      %v1904 = vadd.f32 %v1875, %v1896
      %v1905 = vld [vmem:[%s8] sm:$0x1]
      %v1907 = vperm.slane %v1905, 0
      %v1909 = vmul.f32 %v1901, %v1907
      %v1910 = vmul.f32 %v1902, %v1907
      %v1911 = vmul.f32 %v1903, %v1907
      %v1912 = vmul.f32 %v1904, %v1907
      %v1913 = vld [vmem:[%s9] sm:$0x1]
      %v1915 = vperm.slane %v1913, 0
      %v1917 = vadd.f32 %v1909, %v1915
      %v1918 = vadd.f32 %v1910, %v1915
      %v1919 = vadd.f32 %v1911, %v1915
      %v1920 = vadd.f32 %v1912, %v1915
      %v1921 = vsub.f32 0.0, %v1917
      %v1922 = vsub.f32 0.0, %v1918
      %v1923 = vsub.f32 0.0, %v1919
      %v1924 = vsub.f32 0.0, %v1920
      %v1925 = vmul.f32 %v1921, 1.442695
      %v1926 = vpow.pop %v1925
      %v1927 = vmul.f32 %v1922, 1.442695
      %v1928 = vpow.pop %v1927
      %v1929 = vmul.f32 %v1923, 1.442695
      %v1930 = vpow.pop %v1929
      %v1931 = vmul.f32 %v1924, 1.442695
      %v1932 = vpow.pop %v1931
      %v1933 = vadd.f32 %v1926, 1.0
      %v1934 = vadd.f32 %v1928, 1.0
      %v1935 = vadd.f32 %v1930, 1.0
      %v1936 = vadd.f32 %v1932, 1.0
      %v1937 = vrcp.pop %v1933
      %v1938 = vrcp.pop %v1934
      %v1939 = vrcp.pop %v1935
      %v1940 = vrcp.pop %v1936
      %v1941 = vmul.f32 %v1917, %v1937
      %v1942 = vmul.f32 %v1918, %v1938
      %v1943 = vmul.f32 %v1919, %v1939
      %v1944 = vmul.f32 %v1920, %v1940
      %v1945 = vpack.c.bf16 %v1942, %v1941
      %v1946 = vpack.c.bf16 %v1944, %v1943
      %v1947 = vld [vmem:[%s10] sm:$0xf]
      %v1948 = vld [vmem:[%s10 + $0x4] sm:$0xf]
      %v1949 = vld [vmem:[%s10 + $0x8] sm:$0xf]
      %v1950 = vld [vmem:[%s10 + $0xc] sm:$0xf]
      %v1951 = vld [vmem:[%s10 + $0x10] sm:$0xf]
      %v1952 = vld [vmem:[%s10 + $0x14] sm:$0xf]
      %v1953 = vld [vmem:[%s10 + $0x18] sm:$0xf]
      %v1954 = vld [vmem:[%s10 + $0x1c] sm:$0xf]
      %v1955 = vld [vmem:[%s10 + $0x20] sm:$0xf]
      %v1956 = vld [vmem:[%s10 + $0x24] sm:$0xf]
      %v1957 = vld [vmem:[%s10 + $0x28] sm:$0xf]
      %v1958 = vld [vmem:[%s10 + $0x2c] sm:$0xf]
      %v1959 = vld [vmem:[%s10 + $0x30] sm:$0xf]
      %v1960 = vld [vmem:[%s10 + $0x34] sm:$0xf]
      %v1961 = vld [vmem:[%s10 + $0x38] sm:$0xf]
      %v1962 = vld [vmem:[%s10 + $0x3c] sm:$0xf]
      %v1963 = vld [vmem:[%s11] sm:$0x1]
      %v1965 = vperm.slane %v1963, 0
      %v1983 = vunpack.c.l.b16 %v1947
      %v1984 = vunpack.c.l.b16 %v1948
      %v1985 = vunpack.c.l.b16 %v1949
      %v1986 = vunpack.c.l.b16 %v1950
      %v1987 = vunpack.c.l.b16 %v1951
      %v1988 = vunpack.c.l.b16 %v1952
      %v1989 = vunpack.c.l.b16 %v1953
      %v1990 = vunpack.c.l.b16 %v1954
      %v1991 = vunpack.c.l.b16 %v1955
      %v1992 = vunpack.c.l.b16 %v1956
      %v1993 = vunpack.c.l.b16 %v1957
      %v1994 = vunpack.c.l.b16 %v1958
      %v1995 = vunpack.c.l.b16 %v1959
      %v1996 = vunpack.c.l.b16 %v1960
      %v1997 = vunpack.c.l.b16 %v1961
      %v1998 = vunpack.c.l.b16 %v1962
      %v1999 = vpack.c.b16 %v1984, %v1983
      %v2000 = vpack.c.b16 %v1986, %v1985
      %v2001 = vpack.c.b16 %v1988, %v1987
      %v2002 = vpack.c.b16 %v1990, %v1989
      %v2003 = vpack.c.b16 %v1992, %v1991
      %v2004 = vpack.c.b16 %v1994, %v1993
      %v2005 = vpack.c.b16 %v1996, %v1995
      %v2006 = vpack.c.b16 %v1998, %v1997
      %2015 = vmatpush.bf16.msra.mxu0 %v2006
      %2016 = vmatpush.bf16.msra.mxu0 %v2005
      %2017 = vmatpush.bf16.msra.mxu0 %v2004
      %2018 = vmatpush.bf16.msra.mxu0 %v2003
      %2019 = vmatpush.bf16.msra.mxu0 %v2002
      %2020 = vmatpush.bf16.msra.mxu0 %v2001
      %2021 = vmatpush.bf16.msra.mxu0 %v2000
      %2022 = vmatpush.bf16.msra.mxu0 %v1999
      %2023 = vmatmul.bf16.gmra.mxu0 %v1945
      %v2024 = vpop.f32.mrf.mxu0
      %v2025 = vadd.f32 %v1965, %v2024
      %v2026 = vpop.f32.mrf.mxu0
      %v2027 = vadd.f32 %v1965, %v2026
      %2028 = vmatmul.bf16.gmra.mxu0 %v1946
      %v2029 = vpop.f32.mrf.mxu0
      %v2030 = vadd.f32 %v1965, %v2029
      %v2031 = vpop.f32.mrf.mxu0
      %v2032 = vadd.f32 %v1965, %v2031
      %2033 = vdwg.mxu0
      %2034 = vst [vmem:[%s579] sm:$0xff] %v2025
      %2035 = vst [vmem:[%s579 + $0x8] sm:$0xff] %v2027
      %2036 = vst [vmem:[%s579 + $0x10] sm:$0xff] %v2030
      %2037 = vst [vmem:[%s579 + $0x18] sm:$0xff] %v2032
      %s2038 = smul.u32 4, %s28
      %p2039 = scmp.lt.s32.totalorder %s27, 1
      %s2040 = scalar_select %p2039, %s27, 1
      %p2041 = scmp.lt.s32.totalorder %s2038, 11
      %s2042 = scalar_select %p2041, %s2038, 11
      %s2043 = smul.addr %s2040, 12
      %s2044 = sadd.s32 %s2042, %s2043
      %s2045 = smul.addr %s2044, 8
      %s2046 = scalar_lea.vmem %s12, %s2045
      // Predicated region
      $region69: #{berp_conv_block.1} parent=67 // pred_check
        %p2047 = pneg %p344
      $region70: #{berp_conv_block.1} parent=67 // pred_check_branch
        %2049 = sbr.rel (%p2047) target = $region72
      $region71: #{berp_conv_block.1} parent=67 // pred_region
        %s2050 = smul.u32 4, %s28
      $region72: #{berp_conv_block.1} parent=67 // pred_fallthru
        _
    $region68: #{berp_conv_block.1} parent=5 // pred_fallthru
      _
    %p2051 = scmp.le.s32.totalorder 2, %s18
    // Predicated region
    $region73: #{berp_conv_block.1} parent=5 // pred_check
      %p2052 = pneg %p2051
    $region74: #{berp_conv_block.1} parent=5 // pred_check_branch
      %2054 = sbr.rel (%p2052) target = $region76
    $region75: #{berp_conv_block.1} parent=5 // pred_region
      %s2055 = ssub.s32 %s18, 2
      // Predicated region
      $region77: #{berp_conv_block.1} parent=75 // pred_check
        %p2056 = pneg %p350
      $region78: #{berp_conv_block.1} parent=75 // pred_check_branch
        %2058 = sbr.rel (%p2056) target = $region80
      $region79: #{berp_conv_block.1} parent=75 // pred_region
        %s2059 = smul.u32 4, %s30
        %p2060 = scmp.lt.s32.totalorder %s29, 1
        %s2061 = scalar_select %p2060, %s29, 1
        %p2062 = scmp.lt.s32.totalorder %s2059, 11
        %s2063 = scalar_select %p2062, %s2059, 11
        %s2064 = smul.addr %s2061, 12
        %s2065 = sadd.s32 %s2063, %s2064
        %s2066 = smul.addr %s2065, 8
        %s2067 = scalar_lea.vmem %s12, %s2066
      $region80: #{berp_conv_block.1} parent=75 // pred_fallthru
        _
    $region76: #{berp_conv_block.1} parent=5 // pred_fallthru
      _
  $region6: #{berp_conv_block.1} parent=0 // loop_footer
    %s22 = sadd.s32 1, %s18
  $region7: #{berp_conv_block.1} parent=0 // loop_footer_branch
    %17 = sbr.rel target = $region3
  $region8: #{berp_conv_block.1} parent=0 // loop_exit
    _

</llo_original>
